<compile_context>
chip_gen: v7x
topology: tpu7x:2x2x1
jax: 0.10.0
libtpu: 0.0.40
codegen_flags: <defaults>
</compile_context>

<pallas_src>
import jax
import jax.numpy as jnp
from jax.experimental import pallas as pl
from jax.experimental.pallas import tpu as pltpu

_SUBLANE = 8
_TWO_PI = 6.283185307179586
_INV_2_24 = 1.0 / 16777216.0  # 2**-24


def _hash_u32(x, seed):
    """lowbias32-style uint32 hash, keyed by `seed` (pure VPU int ops)."""
    x = x ^ seed
    x = x ^ (x >> 16)
    x = x * jnp.uint32(0x7FEB352D)
    x = x ^ (x >> 15)
    x = x * jnp.uint32(0x846CA68B)
    x = x ^ (x >> 16)
    return x


def _add_gaussian_noise_kernel(seed_ref, sm_ref, x_ref, o_ref):
    """One (block_rows, width) tile: out = x + N(0,1) * std_eff + mean_eff."""
    i = pl.program_id(0)
    rows, width = x_ref.shape  # static block shape

    x = x_ref[...].astype(jnp.float32)

    # Global linear index of every element in this block (unique per element
    # across the whole grid) -> counter for the keyed hash.
    row_ids = jax.lax.broadcasted_iota(jnp.int32, (rows, width), 0).astype(jnp.uint32)
    col_ids = jax.lax.broadcasted_iota(jnp.int32, (rows, width), 1).astype(jnp.uint32)
    base = (i * rows).astype(jnp.uint32)
    idx = (base + row_ids) * jnp.uint32(width) + col_ids

    seed = seed_ref[0].astype(jnp.uint32)
    u1 = _hash_u32(idx, seed ^ jnp.uint32(0x9E3779B9))
    u2 = _hash_u32(idx, seed ^ jnp.uint32(0x85EBCA6B))

    # Uniforms: f1 in (0, 1] (safe for log), f2 in [0, 1).  Keep 24 bits and
    # convert via int32 (always non-negative) to avoid unsigned->float casts.
    f1 = ((u1 >> 8).astype(jnp.int32).astype(jnp.float32) + 1.0) * jnp.float32(_INV_2_24)
    f2 = (u2 >> 8).astype(jnp.int32).astype(jnp.float32) * jnp.float32(_INV_2_24)

    # Box-Muller -> standard normal (EUP transcendentals: log, sqrt, cos).
    r = jnp.sqrt(-2.0 * jnp.log(f1))
    noise = r * jnp.cos(jnp.float32(_TWO_PI) * f2)

    std_v = sm_ref[0]   # effective std  (already scaled by range if requested)
    mean_v = sm_ref[1]  # effective mean
    o_ref[...] = (x + noise * std_v + mean_v).astype(o_ref.dtype)


def _choose_width(n):
    """Pick a wide, lane-dense last dim; pad only if nothing divides evenly."""
    for w in (2048, 1024, 512, 256, 128):
        if n % w == 0:
            return w, False
    return 512, True


def add_gaussian_noise(x, seed, mean=0.0, std=1.0, scale_to_input_range=False):
    """Pallas equivalent of AddGaussianNoise.forward(x)."""
    orig_shape = x.shape
    orig_dtype = x.dtype
    n = x.size

    # Effective std / mean (range reduction done in the wrapper so the kernel
    # stays a single tiled elementwise pass).
    if scale_to_input_range:
        rng = (jnp.max(x) - jnp.min(x)).astype(jnp.float32)
        std_eff = jnp.float32(std) * rng
        mean_eff = jnp.float32(mean) * rng
    else:
        std_eff = jnp.float32(std)
        mean_eff = jnp.float32(mean)
    sm = jnp.stack([std_eff, mean_eff]).astype(jnp.float32)
    seed_arr = jnp.asarray([seed], dtype=jnp.int32)

    width, need_pad = _choose_width(n)
    flat = x.reshape(-1)
    if need_pad:
        padded = pl.cdiv(n, width) * width
        flat = jnp.pad(flat, (0, padded - n))
    rows = flat.size // width
    x2d = flat.reshape(rows, width)

    # Keep per-block footprint ~<= 2 MiB (f32) so double-buffered in+out tiles
    # fit the scoped-VMEM defaults on v5e (16 MiB) / v6e (32) / v7x (32 of 64).
    max_rows = max(_SUBLANE,
                   ((2 * 1024 * 1024) // (width * 4)) // _SUBLANE * _SUBLANE)
    if rows <= max_rows:
        block_rows = rows              # full extent (allowed even if < 8)
    else:
        block_rows = max_rows          # multiple of 8
    grid = (pl.cdiv(rows, block_rows),)

    itemsize = jnp.dtype(orig_dtype).itemsize
    cost = pl.CostEstimate(
        flops=30 * n,                  # hash + Box-Muller arithmetic
        transcendentals=3 * n,         # log, sqrt, cos per element
        bytes_accessed=2 * n * itemsize,
    )

    out2d = pl.pallas_call(
        _add_gaussian_noise_kernel,
        out_shape=jax.ShapeDtypeStruct((rows, width), orig_dtype),
        grid=grid,
        in_specs=[
            pl.BlockSpec(memory_space=pltpu.MemorySpace.SMEM),   # seed
            pl.BlockSpec(memory_space=pltpu.MemorySpace.SMEM),   # [std, mean]
            pl.BlockSpec((block_rows, width), lambda i: (i, 0)),  # x tile
        ],
        out_specs=pl.BlockSpec((block_rows, width), lambda i: (i, 0)),
        compiler_params=pltpu.CompilerParams(
            dimension_semantics=("parallel",),
            vmem_limit_bytes=32 * 1024 * 1024,
        ),
        cost_estimate=cost,
    )(seed_arr, sm, x2d)

    out = out2d.reshape(-1)
    if need_pad:
        out = out[:n]
    return out.reshape(orig_shape)


if __name__ == "__main__":
    key = jax.random.PRNGKey(0)
    x = jax.random.normal(key, (2, 4, 16, 16), dtype=jnp.float32)  # NCHW

    # Default module config: mean=0.0, std=1.0, scale_to_input_range=False
    y0 = add_gaussian_noise(x, seed=0, mean=0.0, std=1.0,
                            scale_to_input_range=False)
    y0 = jax.block_until_ready(y0)
    assert y0.shape == x.shape and y0.dtype == x.dtype
    noise = y0 - x
    assert bool(jnp.isfinite(noise).all())
    # Loose statistical sanity: noise ~ N(0, 1)
    assert abs(float(noise.mean())) < 0.3
    assert 0.7 < float(noise.std()) < 1.3

    # scale_to_input_range=True path (range reduced in the wrapper)
    y1 = add_gaussian_noise(x, seed=1, mean=0.1, std=0.05,
                            scale_to_input_range=True)
    y1 = jax.block_until_ready(y1)
    assert y1.shape == x.shape and y1.dtype == x.dtype
    assert bool(jnp.isfinite(y1).all())

    print("KERNEL_OK")
</pallas_src>

<mosaic_0001>
module attributes {stable_mosaic.version = 11 : i64} {
  func.func @_add_gaussian_noise_kernel(%arg0: i32, %arg1: memref<1xi32, #tpu.memory_space<smem>>, %arg2: memref<2xf32, #tpu.memory_space<smem>>, %arg3: memref<1x2048xf32, #tpu.memory_space<vmem>>, %arg4: memref<1x2048xf32, #tpu.memory_space<vmem>>) attributes {dimension_semantics = [#tpu.dimension_semantics<parallel>], iteration_bounds = array<i64: 1>, scalar_prefetch = 0 : i64, scratch_operands = 0 : i64, tpu.core_type = #tpu.core_type<tc>, window_params = [{transform_indices = @transform_0, window_bounds = array<i64: 1>}, {transform_indices = @transform_1, window_bounds = array<i64: 2>}, {transform_indices = @transform_2, window_bounds = array<i64: 1, 2048>}, {transform_indices = @transform_3, window_bounds = array<i64: 1, 2048>}]} {
    %c0 = arith.constant 0 : index
    %c0_0 = arith.constant 0 : index
    %0 = vector.load %arg3[%c0, %c0_0] : memref<1x2048xf32, #tpu.memory_space<vmem>>, vector<1x2048xf32>
    %1 = tpu.iota {dimensions = array<i32: 0>} : vector<1x2048xi32>
    %2 = tpu.iota {dimensions = array<i32: 1>} : vector<1x2048xi32>
    %c1_i32 = arith.constant 1 : i32
    %3 = arith.muli %arg0, %c1_i32 : i32
    %4 = vector.broadcast %3 : i32 to vector<1x2048xi32>
    %5 = arith.addi %4, %1 : vector<1x2048xi32>
    %c2048_i32 = arith.constant 2048 : i32
    %6 = vector.broadcast %c2048_i32 : i32 to vector<1x2048xi32>
    %7 = arith.muli %5, %6 : vector<1x2048xi32>
    %8 = arith.addi %7, %2 : vector<1x2048xi32>
    %c0_1 = arith.constant 0 : index
    %9 = memref.load %arg1[%c0_1] : memref<1xi32, #tpu.memory_space<smem>>
    %c-1640531527_i32 = arith.constant -1640531527 : i32
    %10 = arith.xori %9, %c-1640531527_i32 : i32
    %11 = vector.broadcast %10 : i32 to vector<1x2048xi32>
    %12 = arith.xori %8, %11 : vector<1x2048xi32>
    %c16_i32 = arith.constant 16 : i32
    %13 = vector.broadcast %c16_i32 : i32 to vector<1x2048xi32>
    %14 = arith.shrui %12, %13 : vector<1x2048xi32>
    %15 = arith.xori %12, %14 : vector<1x2048xi32>
    %c2146121005_i32 = arith.constant 2146121005 : i32
    %16 = vector.broadcast %c2146121005_i32 : i32 to vector<1x2048xi32>
    %17 = arith.muli %15, %16 : vector<1x2048xi32>
    %c15_i32 = arith.constant 15 : i32
    %18 = vector.broadcast %c15_i32 : i32 to vector<1x2048xi32>
    %19 = arith.shrui %17, %18 : vector<1x2048xi32>
    %20 = arith.xori %17, %19 : vector<1x2048xi32>
    %c-2073254261_i32 = arith.constant -2073254261 : i32
    %21 = vector.broadcast %c-2073254261_i32 : i32 to vector<1x2048xi32>
    %22 = arith.muli %20, %21 : vector<1x2048xi32>
    %c16_i32_2 = arith.constant 16 : i32
    %23 = vector.broadcast %c16_i32_2 : i32 to vector<1x2048xi32>
    %24 = arith.shrui %22, %23 : vector<1x2048xi32>
    %25 = arith.xori %22, %24 : vector<1x2048xi32>
    %c-2048144789_i32 = arith.constant -2048144789 : i32
    %26 = arith.xori %9, %c-2048144789_i32 : i32
    %27 = vector.broadcast %26 : i32 to vector<1x2048xi32>
    %28 = arith.xori %8, %27 : vector<1x2048xi32>
    %c16_i32_3 = arith.constant 16 : i32
    %29 = vector.broadcast %c16_i32_3 : i32 to vector<1x2048xi32>
    %30 = arith.shrui %28, %29 : vector<1x2048xi32>
    %31 = arith.xori %28, %30 : vector<1x2048xi32>
    %c2146121005_i32_4 = arith.constant 2146121005 : i32
    %32 = vector.broadcast %c2146121005_i32_4 : i32 to vector<1x2048xi32>
    %33 = arith.muli %31, %32 : vector<1x2048xi32>
    %c15_i32_5 = arith.constant 15 : i32
    %34 = vector.broadcast %c15_i32_5 : i32 to vector<1x2048xi32>
    %35 = arith.shrui %33, %34 : vector<1x2048xi32>
    %36 = arith.xori %33, %35 : vector<1x2048xi32>
    %c-2073254261_i32_6 = arith.constant -2073254261 : i32
    %37 = vector.broadcast %c-2073254261_i32_6 : i32 to vector<1x2048xi32>
    %38 = arith.muli %36, %37 : vector<1x2048xi32>
    %c16_i32_7 = arith.constant 16 : i32
    %39 = vector.broadcast %c16_i32_7 : i32 to vector<1x2048xi32>
    %40 = arith.shrui %38, %39 : vector<1x2048xi32>
    %41 = arith.xori %38, %40 : vector<1x2048xi32>
    %c8_i32 = arith.constant 8 : i32
    %42 = vector.broadcast %c8_i32 : i32 to vector<1x2048xi32>
    %43 = arith.shrui %25, %42 : vector<1x2048xi32>
    %44 = arith.sitofp %43 : vector<1x2048xi32> to vector<1x2048xf32>
    %cst = arith.constant 1.000000e+00 : f32
    %45 = vector.broadcast %cst : f32 to vector<1x2048xf32>
    %46 = arith.addf %44, %45 : vector<1x2048xf32>
    %cst_8 = arith.constant 5.96046448E-8 : f32
    %47 = vector.broadcast %cst_8 : f32 to vector<1x2048xf32>
    %48 = arith.mulf %46, %47 : vector<1x2048xf32>
    %c8_i32_9 = arith.constant 8 : i32
    %49 = vector.broadcast %c8_i32_9 : i32 to vector<1x2048xi32>
    %50 = arith.shrui %41, %49 : vector<1x2048xi32>
    %51 = arith.sitofp %50 : vector<1x2048xi32> to vector<1x2048xf32>
    %cst_10 = arith.constant 5.96046448E-8 : f32
    %52 = vector.broadcast %cst_10 : f32 to vector<1x2048xf32>
    %53 = arith.mulf %51, %52 : vector<1x2048xf32>
    %54 = math.log %48 : vector<1x2048xf32>
    %cst_11 = arith.constant -2.000000e+00 : f32
    %55 = vector.broadcast %cst_11 : f32 to vector<1x2048xf32>
    %56 = arith.mulf %55, %54 : vector<1x2048xf32>
    %57 = math.sqrt %56 : vector<1x2048xf32>
    %cst_12 = arith.constant 6.28318548 : f32
    %58 = vector.broadcast %cst_12 : f32 to vector<1x2048xf32>
    %59 = arith.mulf %58, %53 : vector<1x2048xf32>
    %60 = math.cos %59 : vector<1x2048xf32>
    %61 = arith.mulf %57, %60 : vector<1x2048xf32>
    %c0_13 = arith.constant 0 : index
    %62 = memref.load %arg2[%c0_13] : memref<2xf32, #tpu.memory_space<smem>>
    %c1 = arith.constant 1 : index
    %63 = memref.load %arg2[%c1] : memref<2xf32, #tpu.memory_space<smem>>
    %64 = vector.broadcast %62 : f32 to vector<1x2048xf32>
    %65 = arith.mulf %61, %64 : vector<1x2048xf32>
    %66 = arith.addf %0, %65 : vector<1x2048xf32>
    %67 = vector.broadcast %63 : f32 to vector<1x2048xf32>
    %68 = arith.addf %66, %67 : vector<1x2048xf32>
    %c0_14 = arith.constant 0 : index
    %c0_15 = arith.constant 0 : index
    %69 = vector.load %arg4[%c0_14, %c0_15] : memref<1x2048xf32, #tpu.memory_space<vmem>>, vector<1x2048xf32>
    tpu.vector_store %arg4[%c0_14, %c0_15], %68 {strides = array<i32>} : memref<1x2048xf32, #tpu.memory_space<vmem>>, vector<1x2048xf32>,
    return
  }
  func.func @transform_0(%arg0: i32) -> i32 {
    %c0_i32 = arith.constant 0 : i32
    %c0_i32_0 = arith.constant 0 : i32
    return %c0_i32 : i32
  }
  func.func @transform_1(%arg0: i32) -> i32 {
    %c0_i32 = arith.constant 0 : i32
    %c0_i32_0 = arith.constant 0 : i32
    return %c0_i32 : i32
  }
  func.func @transform_2(%arg0: i32) -> (i32, i32) {
    %c0_i32 = arith.constant 0 : i32
    %c0_i32_0 = arith.constant 0 : i32
    return %arg0, %c0_i32 : i32, i32
  }
  func.func @transform_3(%arg0: i32) -> (i32, i32) {
    %c0_i32 = arith.constant 0 : i32
    %c0_i32_0 = arith.constant 0 : i32
    return %arg0, %c0_i32 : i32, i32
  }
}

</mosaic_0001>

<llo_original>
// kernel: tpu_custom_call.1
$region0: #{tpu_custom_call.1}
  #allocation0 [shape = 'u32[]', space=smem, size = 0x4, offset = 0x4, fixed_abs, tag = 'smem constant byte address 0x4 - core index']
  #allocation1 [shape = 'u32[144,128]{1,0:T(1,128)}', space=vmem, size = 0x12000, scoped, tag = 'internal scratch']
  #allocation2 [shape = 's32[1]{0:T(128)S(6)}', space=smem, size = 0x200, scoped, tag = 'scoped memory for tpu_custom_call.1']
  %s0 = inlined_call_operand.<no memory space> [shape: s32[1], index: 0, kind: input, shape index: {}]
  %s1 = inlined_call_operand.vmem [shape: f32[2], index: 1, kind: input, shape index: {}]
  %s2 = inlined_call_operand.hbm [shape: f32[1,2048], index: 2, kind: input, shape index: {}]
  %s3 = inlined_call_operand.hbm [shape: f32[1,2048], index: 3, kind: output, shape index: {}]
  %s4 = sld [smem:[#allocation0]]
  $region30: #{tpu_custom_call.1} parent=0
    _
  %s6 = ssub.s32 1, %s4
  %s7 = scalar_select 0, %s6, %s4
  %8 = sst [smem:[#allocation2]] %s0
  $region1: #{tpu_custom_call.1} parent=0
    #allocation3 [shape = 'u8[512]{0}', space=smem, size = 0x200, scoped, tag = 'input window, operand 1, single buffered']
    #allocation4 [shape = 's32[1]{0}', space=sflag, size = 0x4, scoped, tag = 'scoped memory for tpu_custom_call.1']
    #allocation5 [shape = 's32[1]{0}', space=sflag, size = 0x4, scoped, tag = 'scoped memory for tpu_custom_call.1']
    #allocation6 [shape = 's32[1]{0}', space=sflag, size = 0x4, scoped, tag = 'scoped memory for tpu_custom_call.1']
    #allocation7 [shape = 'u8[8192]{0}', space=vmem, size = 0x2000, scoped, tag = 'input window, operand 2, single buffered']
    #allocation8 [shape = 'u8[8192]{0}', space=vmem, size = 0x2000, scoped, tag = 'output window, operand 0, single buffered']
    %9 = vsyncpa [#allocation6], 0
    %10 = vsyncpa [#allocation4], 0
    %11 = vsyncpa [#allocation5], 0
    // Predicated region
    $region2: #{tpu_custom_call.1} parent=1 // pred_check
      _
    $region3: #{tpu_custom_call.1} parent=1 // pred_check_branch
      %13 = sbr.rel (0) target = $region5
    $region4: #{tpu_custom_call.1} parent=1 // pred_region
      _
    $region5: #{tpu_custom_call.1} parent=1 // pred_fallthru
      _
    // Predicated region
    $region6: #{tpu_custom_call.1} parent=1 // pred_check
      _
    $region7: #{tpu_custom_call.1} parent=1 // pred_check_branch
      %15 = sbr.rel (0) target = $region9
    $region8: #{tpu_custom_call.1} parent=1 // pred_region
      %s17 = ssub.s32 16, 16
      %18 = vsyncadd [#allocation6], %s17
      %s20 = sshll.u32 %s1, 4
      %s21 = int_to_ptr.vmem [resolvable:$true] %s20
      %23 = dma.vmem_to_smem %s21, 16, [#allocation3], [#allocation6]
    $region9: #{tpu_custom_call.1} parent=1 // pred_fallthru
      _
    // Predicated region
    $region10: #{tpu_custom_call.1} parent=1 // pred_check
      _
    $region11: #{tpu_custom_call.1} parent=1 // pred_check_branch
      %25 = sbr.rel (0) target = $region13
    $region12: #{tpu_custom_call.1} parent=1 // pred_region
      %s27 = ssub.s32 256, 256
      %28 = vsyncadd [#allocation4], %s27
      %s30 = sshll.u32 [#allocation7], 4
      %s31 = int_to_ptr.vmem [resolvable:$true] %s30
      %33 = dma.hbm_to_vmem [thread:$0]  %s2, 256, %s31, [#allocation4]
    $region13: #{tpu_custom_call.1} parent=1 // pred_fallthru
      _
    // Predicated region
    $region14: #{tpu_custom_call.1} parent=1 // pred_check
      _
    $region15: #{tpu_custom_call.1} parent=1 // pred_check_branch
      %35 = sbr.rel (0) target = $region17
    $region16: #{tpu_custom_call.1} parent=1 // pred_region
      %36 = dma.done [#allocation6], 16
    $region17: #{tpu_custom_call.1} parent=1 // pred_fallthru
      _
    // Predicated region
    $region18: #{tpu_custom_call.1} parent=1 // pred_check
      _
    $region19: #{tpu_custom_call.1} parent=1 // pred_check_branch
      %38 = sbr.rel (0) target = $region21
    $region20: #{tpu_custom_call.1} parent=1 // pred_region
      %39 = dma.done [#allocation4], 256
    $region21: #{tpu_custom_call.1} parent=1 // pred_fallthru
      _
    %40 = sfence
    %v41 = vld [vmem:[#allocation7] sm:$0xff]
    %v42 = vld [vmem:[#allocation7 + $0x8] sm:$0xff]
    %v43 = vlaneseq
    %v44 = vshrl.u32 %v43, 7
    %v45 = vlaneseq
    %v46 = vand.u32 %v45, 127
    %v47 = vadd.s32 %v46, 128
    %v48 = vadd.s32 %v46, 256
    %v49 = vadd.s32 %v46, 384
    %v50 = vadd.s32 %v46, 512
    %v51 = vadd.s32 %v46, 640
    %v52 = vadd.s32 %v46, 768
    %v53 = vadd.s32 %v46, 896
    %v54 = vadd.s32 %v46, 1024
    %v55 = vadd.s32 %v46, 1152
    %v56 = vadd.s32 %v46, 1280
    %v57 = vadd.s32 %v46, 1408
    %v58 = vadd.s32 %v46, 1536
    %v59 = vadd.s32 %v46, 1664
    %v60 = vadd.s32 %v46, 1792
    %v61 = vadd.s32 %v46, 1920
    %v62 = vstv 0
    %v63 = vadd.s32 %v62, %v44
    %v64 = vmul.u32 %v63, 2048
    %v65 = vadd.s32 %v64, %v46
    %v66 = vadd.s32 %v64, %v47
    %v67 = vadd.s32 %v64, %v48
    %v68 = vadd.s32 %v64, %v49
    %v69 = vadd.s32 %v64, %v50
    %v70 = vadd.s32 %v64, %v51
    %v71 = vadd.s32 %v64, %v52
    %v72 = vadd.s32 %v64, %v53
    %v73 = vadd.s32 %v64, %v54
    %v74 = vadd.s32 %v64, %v55
    %v75 = vadd.s32 %v64, %v56
    %v76 = vadd.s32 %v64, %v57
    %v77 = vadd.s32 %v64, %v58
    %v78 = vadd.s32 %v64, %v59
    %v79 = vadd.s32 %v64, %v60
    %v80 = vadd.s32 %v64, %v61
    %s81 = sld [smem:[#allocation2]]
    %s82 = sxor.u32 %s81, 2654435769
    %v83 = vstv %s82
    %v84 = vxor.u32 %v65, %v83
    %v85 = vxor.u32 %v66, %v83
    %v86 = vxor.u32 %v67, %v83
    %v87 = vxor.u32 %v68, %v83
    %v88 = vxor.u32 %v69, %v83
    %v89 = vxor.u32 %v70, %v83
    %v90 = vxor.u32 %v71, %v83
    %v91 = vxor.u32 %v72, %v83
    %v92 = vxor.u32 %v73, %v83
    %v93 = vxor.u32 %v74, %v83
    %v94 = vxor.u32 %v75, %v83
    %v95 = vxor.u32 %v76, %v83
    %v96 = vxor.u32 %v77, %v83
    %v97 = vxor.u32 %v78, %v83
    %v98 = vxor.u32 %v79, %v83
    %v99 = vxor.u32 %v80, %v83
    %v100 = vshrl.u32 %v84, 16
    %v101 = vshrl.u32 %v85, 16
    %v102 = vshrl.u32 %v86, 16
    %v103 = vshrl.u32 %v87, 16
    %v104 = vshrl.u32 %v88, 16
    %v105 = vshrl.u32 %v89, 16
    %v106 = vshrl.u32 %v90, 16
    %v107 = vshrl.u32 %v91, 16
    %v108 = vshrl.u32 %v92, 16
    %v109 = vshrl.u32 %v93, 16
    %v110 = vshrl.u32 %v94, 16
    %v111 = vshrl.u32 %v95, 16
    %v112 = vshrl.u32 %v96, 16
    %v113 = vshrl.u32 %v97, 16
    %v114 = vshrl.u32 %v98, 16
    %v115 = vshrl.u32 %v99, 16
    %v116 = vxor.u32 %v84, %v100
    %v117 = vxor.u32 %v85, %v101
    %v118 = vxor.u32 %v86, %v102
    %v119 = vxor.u32 %v87, %v103
    %v120 = vxor.u32 %v88, %v104
    %v121 = vxor.u32 %v89, %v105
    %v122 = vxor.u32 %v90, %v106
    %v123 = vxor.u32 %v91, %v107
    %v124 = vxor.u32 %v92, %v108
    %v125 = vxor.u32 %v93, %v109
    %v126 = vxor.u32 %v94, %v110
    %v127 = vxor.u32 %v95, %v111
    %v128 = vxor.u32 %v96, %v112
    %v129 = vxor.u32 %v97, %v113
    %v130 = vxor.u32 %v98, %v114
    %v131 = vxor.u32 %v99, %v115
    %v132 = vmul.u32 %v116, 2146121005
    %v133 = vmul.u32 %v117, 2146121005
    %v134 = vmul.u32 %v118, 2146121005
    %v135 = vmul.u32 %v119, 2146121005
    %v136 = vmul.u32 %v120, 2146121005
    %v137 = vmul.u32 %v121, 2146121005
    %v138 = vmul.u32 %v122, 2146121005
    %v139 = vmul.u32 %v123, 2146121005
    %v140 = vmul.u32 %v124, 2146121005
    %v141 = vmul.u32 %v125, 2146121005
    %v142 = vmul.u32 %v126, 2146121005
    %v143 = vmul.u32 %v127, 2146121005
    %v144 = vmul.u32 %v128, 2146121005
    %v145 = vmul.u32 %v129, 2146121005
    %v146 = vmul.u32 %v130, 2146121005
    %v147 = vmul.u32 %v131, 2146121005
    %v148 = vshrl.u32 %v132, 15
    %v149 = vshrl.u32 %v133, 15
    %v150 = vshrl.u32 %v134, 15
    %v151 = vshrl.u32 %v135, 15
    %v152 = vshrl.u32 %v136, 15
    %v153 = vshrl.u32 %v137, 15
    %v154 = vshrl.u32 %v138, 15
    %v155 = vshrl.u32 %v139, 15
    %v156 = vshrl.u32 %v140, 15
    %v157 = vshrl.u32 %v141, 15
    %v158 = vshrl.u32 %v142, 15
    %v159 = vshrl.u32 %v143, 15
    %v160 = vshrl.u32 %v144, 15
    %v161 = vshrl.u32 %v145, 15
    %v162 = vshrl.u32 %v146, 15
    %v163 = vshrl.u32 %v147, 15
    %v164 = vxor.u32 %v132, %v148
    %v165 = vxor.u32 %v133, %v149
    %v166 = vxor.u32 %v134, %v150
    %v167 = vxor.u32 %v135, %v151
    %v168 = vxor.u32 %v136, %v152
    %v169 = vxor.u32 %v137, %v153
    %v170 = vxor.u32 %v138, %v154
    %v171 = vxor.u32 %v139, %v155
    %v172 = vxor.u32 %v140, %v156
    %v173 = vxor.u32 %v141, %v157
    %v174 = vxor.u32 %v142, %v158
    %v175 = vxor.u32 %v143, %v159
    %v176 = vxor.u32 %v144, %v160
    %v177 = vxor.u32 %v145, %v161
    %v178 = vxor.u32 %v146, %v162
    %v179 = vxor.u32 %v147, %v163
    %v180 = vmul.u32 %v164, 2221713035
    %v181 = vmul.u32 %v165, 2221713035
    %v182 = vmul.u32 %v166, 2221713035
    %v183 = vmul.u32 %v167, 2221713035
    %v184 = vmul.u32 %v168, 2221713035
    %v185 = vmul.u32 %v169, 2221713035
    %v186 = vmul.u32 %v170, 2221713035
    %v187 = vmul.u32 %v171, 2221713035
    %v188 = vmul.u32 %v172, 2221713035
    %v189 = vmul.u32 %v173, 2221713035
    %v190 = vmul.u32 %v174, 2221713035
    %v191 = vmul.u32 %v175, 2221713035
    %v192 = vmul.u32 %v176, 2221713035
    %v193 = vmul.u32 %v177, 2221713035
    %v194 = vmul.u32 %v178, 2221713035
    %v195 = vmul.u32 %v179, 2221713035
    %v196 = vshrl.u32 %v180, 16
    %v197 = vshrl.u32 %v181, 16
    %v198 = vshrl.u32 %v182, 16
    %v199 = vshrl.u32 %v183, 16
    %v200 = vshrl.u32 %v184, 16
    %v201 = vshrl.u32 %v185, 16
    %v202 = vshrl.u32 %v186, 16
    %v203 = vshrl.u32 %v187, 16
    %v204 = vshrl.u32 %v188, 16
    %v205 = vshrl.u32 %v189, 16
    %v206 = vshrl.u32 %v190, 16
    %v207 = vshrl.u32 %v191, 16
    %v208 = vshrl.u32 %v192, 16
    %v209 = vshrl.u32 %v193, 16
    %v210 = vshrl.u32 %v194, 16
    %v211 = vshrl.u32 %v195, 16
    %v212 = vxor.u32 %v180, %v196
    %v213 = vxor.u32 %v181, %v197
    %v214 = vxor.u32 %v182, %v198
    %v215 = vxor.u32 %v183, %v199
    %v216 = vxor.u32 %v184, %v200
    %v217 = vxor.u32 %v185, %v201
    %v218 = vxor.u32 %v186, %v202
    %v219 = vxor.u32 %v187, %v203
    %v220 = vxor.u32 %v188, %v204
    %v221 = vxor.u32 %v189, %v205
    %v222 = vxor.u32 %v190, %v206
    %v223 = vxor.u32 %v191, %v207
    %v224 = vxor.u32 %v192, %v208
    %v225 = vxor.u32 %v193, %v209
    %v226 = vxor.u32 %v194, %v210
    %v227 = vxor.u32 %v195, %v211
    %s228 = sxor.u32 %s81, 2246822507
    %v229 = vstv %s228
    %v230 = vxor.u32 %v65, %v229
    %v231 = vxor.u32 %v66, %v229
    %v232 = vxor.u32 %v67, %v229
    %v233 = vxor.u32 %v68, %v229
    %v234 = vxor.u32 %v69, %v229
    %v235 = vxor.u32 %v70, %v229
    %v236 = vxor.u32 %v71, %v229
    %v237 = vxor.u32 %v72, %v229
    %v238 = vxor.u32 %v73, %v229
    %v239 = vxor.u32 %v74, %v229
    %v240 = vxor.u32 %v75, %v229
    %v241 = vxor.u32 %v76, %v229
    %v242 = vxor.u32 %v77, %v229
    %v243 = vxor.u32 %v78, %v229
    %v244 = vxor.u32 %v79, %v229
    %v245 = vxor.u32 %v80, %v229
    %v246 = vshrl.u32 %v230, 16
    %v247 = vshrl.u32 %v231, 16
    %v248 = vshrl.u32 %v232, 16
    %v249 = vshrl.u32 %v233, 16
    %v250 = vshrl.u32 %v234, 16
    %v251 = vshrl.u32 %v235, 16
    %v252 = vshrl.u32 %v236, 16
    %v253 = vshrl.u32 %v237, 16
    %v254 = vshrl.u32 %v238, 16
    %v255 = vshrl.u32 %v239, 16
    %v256 = vshrl.u32 %v240, 16
    %v257 = vshrl.u32 %v241, 16
    %v258 = vshrl.u32 %v242, 16
    %v259 = vshrl.u32 %v243, 16
    %v260 = vshrl.u32 %v244, 16
    %v261 = vshrl.u32 %v245, 16
    %v262 = vxor.u32 %v230, %v246
    %v263 = vxor.u32 %v231, %v247
    %v264 = vxor.u32 %v232, %v248
    %v265 = vxor.u32 %v233, %v249
    %v266 = vxor.u32 %v234, %v250
    %v267 = vxor.u32 %v235, %v251
    %v268 = vxor.u32 %v236, %v252
    %v269 = vxor.u32 %v237, %v253
    %v270 = vxor.u32 %v238, %v254
    %v271 = vxor.u32 %v239, %v255
    %v272 = vxor.u32 %v240, %v256
    %v273 = vxor.u32 %v241, %v257
    %v274 = vxor.u32 %v242, %v258
    %v275 = vxor.u32 %v243, %v259
    %v276 = vxor.u32 %v244, %v260
    %v277 = vxor.u32 %v245, %v261
    %v278 = vmul.u32 %v262, 2146121005
    %v279 = vmul.u32 %v263, 2146121005
    %v280 = vmul.u32 %v264, 2146121005
    %v281 = vmul.u32 %v265, 2146121005
    %v282 = vmul.u32 %v266, 2146121005
    %v283 = vmul.u32 %v267, 2146121005
    %v284 = vmul.u32 %v268, 2146121005
    %v285 = vmul.u32 %v269, 2146121005
    %v286 = vmul.u32 %v270, 2146121005
    %v287 = vmul.u32 %v271, 2146121005
    %v288 = vmul.u32 %v272, 2146121005
    %v289 = vmul.u32 %v273, 2146121005
    %v290 = vmul.u32 %v274, 2146121005
    %v291 = vmul.u32 %v275, 2146121005
    %v292 = vmul.u32 %v276, 2146121005
    %v293 = vmul.u32 %v277, 2146121005
    %v294 = vshrl.u32 %v278, 15
    %v295 = vshrl.u32 %v279, 15
    %v296 = vshrl.u32 %v280, 15
    %v297 = vshrl.u32 %v281, 15
    %v298 = vshrl.u32 %v282, 15
    %v299 = vshrl.u32 %v283, 15
    %v300 = vshrl.u32 %v284, 15
    %v301 = vshrl.u32 %v285, 15
    %v302 = vshrl.u32 %v286, 15
    %v303 = vshrl.u32 %v287, 15
    %v304 = vshrl.u32 %v288, 15
    %v305 = vshrl.u32 %v289, 15
    %v306 = vshrl.u32 %v290, 15
    %v307 = vshrl.u32 %v291, 15
    %v308 = vshrl.u32 %v292, 15
    %v309 = vshrl.u32 %v293, 15
    %v310 = vxor.u32 %v278, %v294
    %v311 = vxor.u32 %v279, %v295
    %v312 = vxor.u32 %v280, %v296
    %v313 = vxor.u32 %v281, %v297
    %v314 = vxor.u32 %v282, %v298
    %v315 = vxor.u32 %v283, %v299
    %v316 = vxor.u32 %v284, %v300
    %v317 = vxor.u32 %v285, %v301
    %v318 = vxor.u32 %v286, %v302
    %v319 = vxor.u32 %v287, %v303
    %v320 = vxor.u32 %v288, %v304
    %v321 = vxor.u32 %v289, %v305
    %v322 = vxor.u32 %v290, %v306
    %v323 = vxor.u32 %v291, %v307
    %v324 = vxor.u32 %v292, %v308
    %v325 = vxor.u32 %v293, %v309
    %v326 = vmul.u32 %v310, 2221713035
    %v327 = vmul.u32 %v311, 2221713035
    %v328 = vmul.u32 %v312, 2221713035
    %v329 = vmul.u32 %v313, 2221713035
    %v330 = vmul.u32 %v314, 2221713035
    %v331 = vmul.u32 %v315, 2221713035
    %v332 = vmul.u32 %v316, 2221713035
    %v333 = vmul.u32 %v317, 2221713035
    %v334 = vmul.u32 %v318, 2221713035
    %v335 = vmul.u32 %v319, 2221713035
    %v336 = vmul.u32 %v320, 2221713035
    %v337 = vmul.u32 %v321, 2221713035
    %v338 = vmul.u32 %v322, 2221713035
    %v339 = vmul.u32 %v323, 2221713035
    %v340 = vmul.u32 %v324, 2221713035
    %v341 = vmul.u32 %v325, 2221713035
    %v342 = vshrl.u32 %v326, 16
    %v343 = vshrl.u32 %v327, 16
    %v344 = vshrl.u32 %v328, 16
    %v345 = vshrl.u32 %v329, 16
    %v346 = vshrl.u32 %v330, 16
    %v347 = vshrl.u32 %v331, 16
    %v348 = vshrl.u32 %v332, 16
    %v349 = vshrl.u32 %v333, 16
    %v350 = vshrl.u32 %v334, 16
    %v351 = vshrl.u32 %v335, 16
    %v352 = vshrl.u32 %v336, 16
    %v353 = vshrl.u32 %v337, 16
    %v354 = vshrl.u32 %v338, 16
    %v355 = vshrl.u32 %v339, 16
    %v356 = vshrl.u32 %v340, 16
    %v357 = vshrl.u32 %v341, 16
    %v358 = vxor.u32 %v326, %v342
    %v359 = vxor.u32 %v327, %v343
    %v360 = vxor.u32 %v328, %v344
    %v361 = vxor.u32 %v329, %v345
    %v362 = vxor.u32 %v330, %v346
    %v363 = vxor.u32 %v331, %v347
    %v364 = vxor.u32 %v332, %v348
    %v365 = vxor.u32 %v333, %v349
    %v366 = vxor.u32 %v334, %v350
    %v367 = vxor.u32 %v335, %v351
    %v368 = vxor.u32 %v336, %v352
    %v369 = vxor.u32 %v337, %v353
    %v370 = vxor.u32 %v338, %v354
    %v371 = vxor.u32 %v339, %v355
    %v372 = vxor.u32 %v340, %v356
    %v373 = vxor.u32 %v341, %v357
    %v374 = vshrl.u32 %v212, 8
    %v375 = vshrl.u32 %v213, 8
    %v376 = vshrl.u32 %v214, 8
    %v377 = vshrl.u32 %v215, 8
    %v378 = vshrl.u32 %v216, 8
    %v379 = vshrl.u32 %v217, 8
    %v380 = vshrl.u32 %v218, 8
    %v381 = vshrl.u32 %v219, 8
    %v382 = vshrl.u32 %v220, 8
    %v383 = vshrl.u32 %v221, 8
    %v384 = vshrl.u32 %v222, 8
    %v385 = vshrl.u32 %v223, 8
    %v386 = vshrl.u32 %v224, 8
    %v387 = vshrl.u32 %v225, 8
    %v388 = vshrl.u32 %v226, 8
    %v389 = vshrl.u32 %v227, 8
    %v390 = vcvt.s32.f32 %v374
    %v391 = vcvt.s32.f32 %v375
    %v392 = vcvt.s32.f32 %v376
    %v393 = vcvt.s32.f32 %v377
    %v394 = vcvt.s32.f32 %v378
    %v395 = vcvt.s32.f32 %v379
    %v396 = vcvt.s32.f32 %v380
    %v397 = vcvt.s32.f32 %v381
    %v398 = vcvt.s32.f32 %v382
    %v399 = vcvt.s32.f32 %v383
    %v400 = vcvt.s32.f32 %v384
    %v401 = vcvt.s32.f32 %v385
    %v402 = vcvt.s32.f32 %v386
    %v403 = vcvt.s32.f32 %v387
    %v404 = vcvt.s32.f32 %v388
    %v405 = vcvt.s32.f32 %v389
    %v406 = vadd.f32 %v390, 1.0
    %v407 = vadd.f32 %v391, 1.0
    %v408 = vadd.f32 %v392, 1.0
    %v409 = vadd.f32 %v393, 1.0
    %v410 = vadd.f32 %v394, 1.0
    %v411 = vadd.f32 %v395, 1.0
    %v412 = vadd.f32 %v396, 1.0
    %v413 = vadd.f32 %v397, 1.0
    %v414 = vadd.f32 %v398, 1.0
    %v415 = vadd.f32 %v399, 1.0
    %v416 = vadd.f32 %v400, 1.0
    %v417 = vadd.f32 %v401, 1.0
    %v418 = vadd.f32 %v402, 1.0
    %v419 = vadd.f32 %v403, 1.0
    %v420 = vadd.f32 %v404, 1.0
    %v421 = vadd.f32 %v405, 1.0
    %v422 = vmul.f32 %v406, 5.9604645e-08
    %v423 = vmul.f32 %v407, 5.9604645e-08
    %v424 = vmul.f32 %v408, 5.9604645e-08
    %v425 = vmul.f32 %v409, 5.9604645e-08
    %v426 = vmul.f32 %v410, 5.9604645e-08
    %v427 = vmul.f32 %v411, 5.9604645e-08
    %v428 = vmul.f32 %v412, 5.9604645e-08
    %v429 = vmul.f32 %v413, 5.9604645e-08
    %v430 = vmul.f32 %v414, 5.9604645e-08
    %v431 = vmul.f32 %v415, 5.9604645e-08
    %v432 = vmul.f32 %v416, 5.9604645e-08
    %v433 = vmul.f32 %v417, 5.9604645e-08
    %v434 = vmul.f32 %v418, 5.9604645e-08
    %v435 = vmul.f32 %v419, 5.9604645e-08
    %v436 = vmul.f32 %v420, 5.9604645e-08
    %v437 = vmul.f32 %v421, 5.9604645e-08
    %v438 = vshrl.u32 %v358, 8
    %v439 = vshrl.u32 %v359, 8
    %v440 = vshrl.u32 %v360, 8
    %v441 = vshrl.u32 %v361, 8
    %v442 = vshrl.u32 %v362, 8
    %v443 = vshrl.u32 %v363, 8
    %v444 = vshrl.u32 %v364, 8
    %v445 = vshrl.u32 %v365, 8
    %v446 = vshrl.u32 %v366, 8
    %v447 = vshrl.u32 %v367, 8
    %v448 = vshrl.u32 %v368, 8
    %v449 = vshrl.u32 %v369, 8
    %v450 = vshrl.u32 %v370, 8
    %v451 = vshrl.u32 %v371, 8
    %v452 = vshrl.u32 %v372, 8
    %v453 = vshrl.u32 %v373, 8
    %v454 = vcvt.s32.f32 %v438
    %v455 = vcvt.s32.f32 %v439
    %v456 = vcvt.s32.f32 %v440
    %v457 = vcvt.s32.f32 %v441
    %v458 = vcvt.s32.f32 %v442
    %v459 = vcvt.s32.f32 %v443
    %v460 = vcvt.s32.f32 %v444
    %v461 = vcvt.s32.f32 %v445
    %v462 = vcvt.s32.f32 %v446
    %v463 = vcvt.s32.f32 %v447
    %v464 = vcvt.s32.f32 %v448
    %v465 = vcvt.s32.f32 %v449
    %v466 = vcvt.s32.f32 %v450
    %v467 = vcvt.s32.f32 %v451
    %v468 = vcvt.s32.f32 %v452
    %v469 = vcvt.s32.f32 %v453
    %v470 = vmul.f32 %v454, 5.9604645e-08
    %v471 = vmul.f32 %v455, 5.9604645e-08
    %v472 = vmul.f32 %v456, 5.9604645e-08
    %v473 = vmul.f32 %v457, 5.9604645e-08
    %v474 = vmul.f32 %v458, 5.9604645e-08
    %v475 = vmul.f32 %v459, 5.9604645e-08
    %v476 = vmul.f32 %v460, 5.9604645e-08
    %v477 = vmul.f32 %v461, 5.9604645e-08
    %v478 = vmul.f32 %v462, 5.9604645e-08
    %v479 = vmul.f32 %v463, 5.9604645e-08
    %v480 = vmul.f32 %v464, 5.9604645e-08
    %v481 = vmul.f32 %v465, 5.9604645e-08
    %v482 = vmul.f32 %v466, 5.9604645e-08
    %v483 = vmul.f32 %v467, 5.9604645e-08
    %v484 = vmul.f32 %v468, 5.9604645e-08
    %v485 = vmul.f32 %v469, 5.9604645e-08
    %v486 = vlog2.pop %v422
    %v487 = vmul.f32 %v486, 0.6931472
    %v488 = vlog2.pop %v423
    %v489 = vmul.f32 %v488, 0.6931472
    %v490 = vlog2.pop %v424
    %v491 = vmul.f32 %v490, 0.6931472
    %v492 = vlog2.pop %v425
    %v493 = vmul.f32 %v492, 0.6931472
    %v494 = vlog2.pop %v426
    %v495 = vmul.f32 %v494, 0.6931472
    %v496 = vlog2.pop %v427
    %v497 = vmul.f32 %v496, 0.6931472
    %v498 = vlog2.pop %v428
    %v499 = vmul.f32 %v498, 0.6931472
    %v500 = vlog2.pop %v429
    %v501 = vmul.f32 %v500, 0.6931472
    %v502 = vlog2.pop %v430
    %v503 = vmul.f32 %v502, 0.6931472
    %v504 = vlog2.pop %v431
    %v505 = vmul.f32 %v504, 0.6931472
    %v506 = vlog2.pop %v432
    %v507 = vmul.f32 %v506, 0.6931472
    %v508 = vlog2.pop %v433
    %v509 = vmul.f32 %v508, 0.6931472
    %v510 = vlog2.pop %v434
    %v511 = vmul.f32 %v510, 0.6931472
    %v512 = vlog2.pop %v435
    %v513 = vmul.f32 %v512, 0.6931472
    %v514 = vlog2.pop %v436
    %v515 = vmul.f32 %v514, 0.6931472
    %v516 = vlog2.pop %v437
    %v517 = vmul.f32 %v516, 0.6931472
    %v518 = vmul.f32 %v487, -2.0
    %v519 = vmul.f32 %v489, -2.0
    %v520 = vmul.f32 %v491, -2.0
    %v521 = vmul.f32 %v493, -2.0
    %v522 = vmul.f32 %v495, -2.0
    %v523 = vmul.f32 %v497, -2.0
    %v524 = vmul.f32 %v499, -2.0
    %v525 = vmul.f32 %v501, -2.0
    %v526 = vmul.f32 %v503, -2.0
    %v527 = vmul.f32 %v505, -2.0
    %v528 = vmul.f32 %v507, -2.0
    %v529 = vmul.f32 %v509, -2.0
    %v530 = vmul.f32 %v511, -2.0
    %v531 = vmul.f32 %v513, -2.0
    %v532 = vmul.f32 %v515, -2.0
    %v533 = vmul.f32 %v517, -2.0
    %v534 = vrsqrt.pop %v518
    %v535 = vmul.f32 %v518, %v534
    %vm536 = vcmp.eq.f32.partialorder %v518, inf
    %v537 = vsel %vm536, %v518, %v535
    %vm538 = vcmp.eq.f32.partialorder %v518, 0.0
    %v539 = vand.u32 %v518, 2147483648
    %v540 = vsel %vm538, %v539, %v537
    %v541 = vrsqrt.pop %v519
    %v542 = vmul.f32 %v519, %v541
    %vm543 = vcmp.eq.f32.partialorder %v519, inf
    %v544 = vsel %vm543, %v519, %v542
    %vm545 = vcmp.eq.f32.partialorder %v519, 0.0
    %v546 = vand.u32 %v519, 2147483648
    %v547 = vsel %vm545, %v546, %v544
    %v548 = vrsqrt.pop %v520
    %v549 = vmul.f32 %v520, %v548
    %vm550 = vcmp.eq.f32.partialorder %v520, inf
    %v551 = vsel %vm550, %v520, %v549
    %vm552 = vcmp.eq.f32.partialorder %v520, 0.0
    %v553 = vand.u32 %v520, 2147483648
    %v554 = vsel %vm552, %v553, %v551
    %v555 = vrsqrt.pop %v521
    %v556 = vmul.f32 %v521, %v555
    %vm557 = vcmp.eq.f32.partialorder %v521, inf
    %v558 = vsel %vm557, %v521, %v556
    %vm559 = vcmp.eq.f32.partialorder %v521, 0.0
    %v560 = vand.u32 %v521, 2147483648
    %v561 = vsel %vm559, %v560, %v558
    %v562 = vrsqrt.pop %v522
    %v563 = vmul.f32 %v522, %v562
    %vm564 = vcmp.eq.f32.partialorder %v522, inf
    %v565 = vsel %vm564, %v522, %v563
    %vm566 = vcmp.eq.f32.partialorder %v522, 0.0
    %v567 = vand.u32 %v522, 2147483648
    %v568 = vsel %vm566, %v567, %v565
    %v569 = vrsqrt.pop %v523
    %v570 = vmul.f32 %v523, %v569
    %vm571 = vcmp.eq.f32.partialorder %v523, inf
    %v572 = vsel %vm571, %v523, %v570
    %vm573 = vcmp.eq.f32.partialorder %v523, 0.0
    %v574 = vand.u32 %v523, 2147483648
    %v575 = vsel %vm573, %v574, %v572
    %v576 = vrsqrt.pop %v524
    %v577 = vmul.f32 %v524, %v576
    %vm578 = vcmp.eq.f32.partialorder %v524, inf
    %v579 = vsel %vm578, %v524, %v577
    %vm580 = vcmp.eq.f32.partialorder %v524, 0.0
    %v581 = vand.u32 %v524, 2147483648
    %v582 = vsel %vm580, %v581, %v579
    %v583 = vrsqrt.pop %v525
    %v584 = vmul.f32 %v525, %v583
    %vm585 = vcmp.eq.f32.partialorder %v525, inf
    %v586 = vsel %vm585, %v525, %v584
    %vm587 = vcmp.eq.f32.partialorder %v525, 0.0
    %v588 = vand.u32 %v525, 2147483648
    %v589 = vsel %vm587, %v588, %v586
    %v590 = vrsqrt.pop %v526
    %v591 = vmul.f32 %v526, %v590
    %vm592 = vcmp.eq.f32.partialorder %v526, inf
    %v593 = vsel %vm592, %v526, %v591
    %vm594 = vcmp.eq.f32.partialorder %v526, 0.0
    %v595 = vand.u32 %v526, 2147483648
    %v596 = vsel %vm594, %v595, %v593
    %v597 = vrsqrt.pop %v527
    %v598 = vmul.f32 %v527, %v597
    %vm599 = vcmp.eq.f32.partialorder %v527, inf
    %v600 = vsel %vm599, %v527, %v598
    %vm601 = vcmp.eq.f32.partialorder %v527, 0.0
    %v602 = vand.u32 %v527, 2147483648
    %v603 = vsel %vm601, %v602, %v600
    %v604 = vrsqrt.pop %v528
    %v605 = vmul.f32 %v528, %v604
    %vm606 = vcmp.eq.f32.partialorder %v528, inf
    %v607 = vsel %vm606, %v528, %v605
    %vm608 = vcmp.eq.f32.partialorder %v528, 0.0
    %v609 = vand.u32 %v528, 2147483648
    %v610 = vsel %vm608, %v609, %v607
    %v611 = vrsqrt.pop %v529
    %v612 = vmul.f32 %v529, %v611
    %vm613 = vcmp.eq.f32.partialorder %v529, inf
    %v614 = vsel %vm613, %v529, %v612
    %vm615 = vcmp.eq.f32.partialorder %v529, 0.0
    %v616 = vand.u32 %v529, 2147483648
    %v617 = vsel %vm615, %v616, %v614
    %v618 = vrsqrt.pop %v530
    %v619 = vmul.f32 %v530, %v618
    %vm620 = vcmp.eq.f32.partialorder %v530, inf
    %v621 = vsel %vm620, %v530, %v619
    %vm622 = vcmp.eq.f32.partialorder %v530, 0.0
    %v623 = vand.u32 %v530, 2147483648
    %v624 = vsel %vm622, %v623, %v621
    %v625 = vrsqrt.pop %v531
    %v626 = vmul.f32 %v531, %v625
    %vm627 = vcmp.eq.f32.partialorder %v531, inf
    %v628 = vsel %vm627, %v531, %v626
    %vm629 = vcmp.eq.f32.partialorder %v531, 0.0
    %v630 = vand.u32 %v531, 2147483648
    %v631 = vsel %vm629, %v630, %v628
    %v632 = vrsqrt.pop %v532
    %v633 = vmul.f32 %v532, %v632
    %vm634 = vcmp.eq.f32.partialorder %v532, inf
    %v635 = vsel %vm634, %v532, %v633
    %vm636 = vcmp.eq.f32.partialorder %v532, 0.0
    %v637 = vand.u32 %v532, 2147483648
    %v638 = vsel %vm636, %v637, %v635
    %v639 = vrsqrt.pop %v533
    %v640 = vmul.f32 %v533, %v639
    %vm641 = vcmp.eq.f32.partialorder %v533, inf
    %v642 = vsel %vm641, %v533, %v640
    %vm643 = vcmp.eq.f32.partialorder %v533, 0.0
    %v644 = vand.u32 %v533, 2147483648
    %v645 = vsel %vm643, %v644, %v642
    %v646 = vmul.f32 %v470, 6.2831855
    %v647 = vmul.f32 %v471, 6.2831855
    %v648 = vmul.f32 %v472, 6.2831855
    %v649 = vmul.f32 %v473, 6.2831855
    %v650 = vmul.f32 %v474, 6.2831855
    %v651 = vmul.f32 %v475, 6.2831855
    %v652 = vmul.f32 %v476, 6.2831855
    %v653 = vmul.f32 %v477, 6.2831855
    %v654 = vmul.f32 %v478, 6.2831855
    %v655 = vmul.f32 %v479, 6.2831855
    %v656 = vmul.f32 %v480, 6.2831855
    %v657 = vmul.f32 %v481, 6.2831855
    %v658 = vmul.f32 %v482, 6.2831855
    %v659 = vmul.f32 %v483, 6.2831855
    %v660 = vmul.f32 %v484, 6.2831855
    %v661 = vmul.f32 %v485, 6.2831855
    %v662 = vand.u32 2147483647, %v646
    %vm663 = vcmp.le.f32.partialorder %v662, 0.7853982
    %vm664 = vcmp.lt.s32.totalorder %v646, 0
    %v665 = vand.u32 %v646, 2139095040
    %v666 = vshrl.u32 %v665, 23
    %v667 = vsub.s32 %v666, 127
    %v668 = vand.u32 2147483647, %v646
    %v669 = vand.u32 %v668, 8388607
    %v670 = vor.u32 %v669, 8388608
    %v671 = vsub.s32 0, %v670
    %v672 = vadd.s32 %v667, 1
    %vm673 = vcmp.gt.s32.totalorder %v672, 0
    %v674 = vsel %vm673, %v672, 0
    %v675 = vshrl.u32 %v674, 5
    %v676 = vand.u32 %v674, 31
    %v677 = vsub.s32 32, %v676
    %v678 = vshrl.u32 683565275, %v677
    %v679 = vshll.u32 683565275, %v676
    %v680 = vshrl.u32 2475754826, %v677
    %v681 = vor.u32 %v679, %v680
    %v682 = vshll.u32 2475754826, %v676
    %v683 = vshrl.u32 2131351028, %v677
    %v684 = vor.u32 %v682, %v683
    %v685 = vshll.u32 2131351028, %v676
    %v686 = vshrl.u32 2102212464, %v677
    %v687 = vor.u32 %v685, %v686
    %v688 = vshll.u32 2102212464, %v676
    %v689 = vshrl.u32 920167782, %v677
    %v690 = vor.u32 %v688, %v689
    %v691 = vshll.u32 920167782, %v676
    %v692 = vshrl.u32 1326507024, %v677
    %v693 = vor.u32 %v691, %v692
    %vm694 = vcmp.lt.s32.totalorder %v675, 1
    %vm695 = vcmp.lt.s32.totalorder %v675, 2
    %vm696 = vcmp.lt.s32.totalorder %v675, 3
    %vm697 = vcmp.lt.s32.totalorder %v675, 4
    %v698 = vsel %vm694, %v678, %v681
    %v699 = vsel %vm697, %v687, 2102212464
    %v700 = vsel %vm696, %v684, %v699
    %v701 = vsel %vm695, %v698, %v700
    %v702 = vsel %vm694, %v681, %v684
    %v703 = vsel %vm697, %v690, 920167782
    %v704 = vsel %vm696, %v687, %v703
    %v705 = vsel %vm695, %v702, %v704
    %v706 = vsel %vm694, %v684, %v687
    %v707 = vsel %vm697, %v693, 1326507024
    %v708 = vsel %vm696, %v690, %v707
    %v709 = vsel %vm695, %v706, %v708
    %v710 = vshll.u32 %v670, 8
    %v711 = vmul.u32.u64.compose %v710, %v709
    %v712 = vextract.low.u32 %v711
    %v713 = vextract.high.u32 %v711
    %v714 = vmul.u32.u64.compose %v710, %v705
    %v715 = vextract.low.u32 %v714
    %v716 = vextract.high.u32 %v714
    %v717 = vmul.u32 %v710, %v701
    %v718 = vadd.s32 %v713, %v715
    %vm719 = vc.u32 %v713, %v715
    %v720 = vadd.s32 %v716, 1
    %v721 = vsel %vm719, %v720, %v716
    %v722 = vadd.s32 %v717, %v721
    %v723 = vadd.s32 %v722, 536870912
    %v724 = vshrl.u32 %v723, 30
    %v725 = vshll.u32 %v724, 30
    %v726 = vsub.s32 %v722, %v725
    %vm727 = vcmp.lt.s32.totalorder %v726, 0
    %v728 = vsub.s32 0, %v726
    %v729 = vsel %vm727, %v728, %v726
    %v730 = vclz %v729
    %v731 = vsub.s32 %v730, 2
    %vm732 = vcmp.gt.s32.totalorder 0, %v731
    %v733 = vsel %vm732, 0, %v731
    %v734 = vsub.s32 32, %v733
    %v735 = vshll.u32 %v726, %v733
    %v736 = vshrl.u32 %v718, %v734
    %v737 = vor.u32 %v735, %v736
    %v738 = vsub.s32 4294967266, %v733
    %v739 = vadd.s32 %v738, 127
    %v740 = vshll.u32 %v739, 23
    %v741 = vor.u32 4788187, %v740
    %v742 = vand.u32 2147483647, %v741
    %v744 = vcvt.s32.f32 %v737
    %v745 = vmul.f32 %v744, %v742
    %v746 = vxor.u32 %v745, 2147483648
    %v747 = vsel %vm664, %v746, %v745
    %v748 = vsub.s32 4, %v724
    %v749 = vsel %vm664, %v748, %v724
    %v750 = vsel %vm663, %v646, %v747
    %v751 = vsel %vm663, 0, %v749
    %v752 = vcosq.f32.pop %v750
    %v753 = vsinq.f32.pop %v750
    %vm754 = vweird.f32 %v646
    %v755 = vand.u32 %v751, 3
    %vm756 = vcmp.lt.s32.totalorder %v755, 2
    %vm757 = vcmp.eq.s32.totalorder %v755, 0
    %v758 = vxor.u32 %v753, 2147483648
    %v759 = vsel %vm757, %v752, %v758
    %vm760 = vcmp.eq.s32.totalorder %v755, 2
    %v761 = vxor.u32 %v752, 2147483648
    %v762 = vsel %vm760, %v761, %v753
    %v763 = vsel %vm756, %v759, %v762
    %v764 = vsel %vm754, nan, %v763
    %v765 = vand.u32 2147483647, %v647
    %vm766 = vcmp.le.f32.partialorder %v765, 0.7853982
    %vm767 = vcmp.lt.s32.totalorder %v647, 0
    %v768 = vand.u32 %v647, 2139095040
    %v769 = vshrl.u32 %v768, 23
    %v770 = vsub.s32 %v769, 127
    %v771 = vand.u32 2147483647, %v647
    %v772 = vand.u32 %v771, 8388607
    %v773 = vor.u32 %v772, 8388608
    %v774 = vsub.s32 0, %v773
    %v775 = vadd.s32 %v770, 1
    %vm776 = vcmp.gt.s32.totalorder %v775, 0
    %v777 = vsel %vm776, %v775, 0
    %v778 = vshrl.u32 %v777, 5
    %v779 = vand.u32 %v777, 31
    %v780 = vsub.s32 32, %v779
    %v781 = vshrl.u32 683565275, %v780
    %v782 = vshll.u32 683565275, %v779
    %v783 = vshrl.u32 2475754826, %v780
    %v784 = vor.u32 %v782, %v783
    %v785 = vshll.u32 2475754826, %v779
    %v786 = vshrl.u32 2131351028, %v780
    %v787 = vor.u32 %v785, %v786
    %v788 = vshll.u32 2131351028, %v779
    %v789 = vshrl.u32 2102212464, %v780
    %v790 = vor.u32 %v788, %v789
    %v791 = vshll.u32 2102212464, %v779
    %v792 = vshrl.u32 920167782, %v780
    %v793 = vor.u32 %v791, %v792
    %v794 = vshll.u32 920167782, %v779
    %v795 = vshrl.u32 1326507024, %v780
    %v796 = vor.u32 %v794, %v795
    %vm797 = vcmp.lt.s32.totalorder %v778, 1
    %vm798 = vcmp.lt.s32.totalorder %v778, 2
    %vm799 = vcmp.lt.s32.totalorder %v778, 3
    %vm800 = vcmp.lt.s32.totalorder %v778, 4
    %v801 = vsel %vm797, %v781, %v784
    %v802 = vsel %vm800, %v790, 2102212464
    %v803 = vsel %vm799, %v787, %v802
    %v804 = vsel %vm798, %v801, %v803
    %v805 = vsel %vm797, %v784, %v787
    %v806 = vsel %vm800, %v793, 920167782
    %v807 = vsel %vm799, %v790, %v806
    %v808 = vsel %vm798, %v805, %v807
    %v809 = vsel %vm797, %v787, %v790
    %v810 = vsel %vm800, %v796, 1326507024
    %v811 = vsel %vm799, %v793, %v810
    %v812 = vsel %vm798, %v809, %v811
    %v813 = vshll.u32 %v773, 8
    %v814 = vmul.u32.u64.compose %v813, %v812
    %v815 = vextract.low.u32 %v814
    %v816 = vextract.high.u32 %v814
    %v817 = vmul.u32.u64.compose %v813, %v808
    %v818 = vextract.low.u32 %v817
    %v819 = vextract.high.u32 %v817
    %v820 = vmul.u32 %v813, %v804
    %v821 = vadd.s32 %v816, %v818
    %vm822 = vc.u32 %v816, %v818
    %v823 = vadd.s32 %v819, 1
    %v824 = vsel %vm822, %v823, %v819
    %v825 = vadd.s32 %v820, %v824
    %v826 = vadd.s32 %v825, 536870912
    %v827 = vshrl.u32 %v826, 30
    %v828 = vshll.u32 %v827, 30
    %v829 = vsub.s32 %v825, %v828
    %vm830 = vcmp.lt.s32.totalorder %v829, 0
    %v831 = vsub.s32 0, %v829
    %v832 = vsel %vm830, %v831, %v829
    %v833 = vclz %v832
    %v834 = vsub.s32 %v833, 2
    %vm835 = vcmp.gt.s32.totalorder 0, %v834
    %v836 = vsel %vm835, 0, %v834
    %v837 = vsub.s32 32, %v836
    %v838 = vshll.u32 %v829, %v836
    %v839 = vshrl.u32 %v821, %v837
    %v840 = vor.u32 %v838, %v839
    %v841 = vsub.s32 4294967266, %v836
    %v842 = vadd.s32 %v841, 127
    %v843 = vshll.u32 %v842, 23
    %v844 = vor.u32 4788187, %v843
    %v845 = vand.u32 2147483647, %v844
    %v847 = vcvt.s32.f32 %v840
    %v848 = vmul.f32 %v847, %v845
    %v849 = vxor.u32 %v848, 2147483648
    %v850 = vsel %vm767, %v849, %v848
    %v851 = vsub.s32 4, %v827
    %v852 = vsel %vm767, %v851, %v827
    %v853 = vsel %vm766, %v647, %v850
    %v854 = vsel %vm766, 0, %v852
    %v855 = vcosq.f32.pop %v853
    %v856 = vsinq.f32.pop %v853
    %vm857 = vweird.f32 %v647
    %v858 = vand.u32 %v854, 3
    %vm859 = vcmp.lt.s32.totalorder %v858, 2
    %vm860 = vcmp.eq.s32.totalorder %v858, 0
    %v861 = vxor.u32 %v856, 2147483648
    %v862 = vsel %vm860, %v855, %v861
    %vm863 = vcmp.eq.s32.totalorder %v858, 2
    %v864 = vxor.u32 %v855, 2147483648
    %v865 = vsel %vm863, %v864, %v856
    %v866 = vsel %vm859, %v862, %v865
    %v867 = vsel %vm857, nan, %v866
    %v868 = vand.u32 2147483647, %v648
    %vm869 = vcmp.le.f32.partialorder %v868, 0.7853982
    %vm870 = vcmp.lt.s32.totalorder %v648, 0
    %v871 = vand.u32 %v648, 2139095040
    %v872 = vshrl.u32 %v871, 23
    %v873 = vsub.s32 %v872, 127
    %v874 = vand.u32 2147483647, %v648
    %v875 = vand.u32 %v874, 8388607
    %v876 = vor.u32 %v875, 8388608
    %v877 = vsub.s32 0, %v876
    %v878 = vadd.s32 %v873, 1
    %vm879 = vcmp.gt.s32.totalorder %v878, 0
    %v880 = vsel %vm879, %v878, 0
    %v881 = vshrl.u32 %v880, 5
    %v882 = vand.u32 %v880, 31
    %v883 = vsub.s32 32, %v882
    %v884 = vshrl.u32 683565275, %v883
    %v885 = vshll.u32 683565275, %v882
    %v886 = vshrl.u32 2475754826, %v883
    %v887 = vor.u32 %v885, %v886
    %v888 = vshll.u32 2475754826, %v882
    %v889 = vshrl.u32 2131351028, %v883
    %v890 = vor.u32 %v888, %v889
    %v891 = vshll.u32 2131351028, %v882
    %v892 = vshrl.u32 2102212464, %v883
    %v893 = vor.u32 %v891, %v892
    %v894 = vshll.u32 2102212464, %v882
    %v895 = vshrl.u32 920167782, %v883
    %v896 = vor.u32 %v894, %v895
    %v897 = vshll.u32 920167782, %v882
    %v898 = vshrl.u32 1326507024, %v883
    %v899 = vor.u32 %v897, %v898
    %vm900 = vcmp.lt.s32.totalorder %v881, 1
    %vm901 = vcmp.lt.s32.totalorder %v881, 2
    %vm902 = vcmp.lt.s32.totalorder %v881, 3
    %vm903 = vcmp.lt.s32.totalorder %v881, 4
    %v904 = vsel %vm900, %v884, %v887
    %v905 = vsel %vm903, %v893, 2102212464
    %v906 = vsel %vm902, %v890, %v905
    %v907 = vsel %vm901, %v904, %v906
    %v908 = vsel %vm900, %v887, %v890
    %v909 = vsel %vm903, %v896, 920167782
    %v910 = vsel %vm902, %v893, %v909
    %v911 = vsel %vm901, %v908, %v910
    %v912 = vsel %vm900, %v890, %v893
    %v913 = vsel %vm903, %v899, 1326507024
    %v914 = vsel %vm902, %v896, %v913
    %v915 = vsel %vm901, %v912, %v914
    %v916 = vshll.u32 %v876, 8
    %v917 = vmul.u32.u64.compose %v916, %v915
    %v918 = vextract.low.u32 %v917
    %v919 = vextract.high.u32 %v917
    %v920 = vmul.u32.u64.compose %v916, %v911
    %v921 = vextract.low.u32 %v920
    %v922 = vextract.high.u32 %v920
    %v923 = vmul.u32 %v916, %v907
    %v924 = vadd.s32 %v919, %v921
    %vm925 = vc.u32 %v919, %v921
    %v926 = vadd.s32 %v922, 1
    %v927 = vsel %vm925, %v926, %v922
    %v928 = vadd.s32 %v923, %v927
    %v929 = vadd.s32 %v928, 536870912
    %v930 = vshrl.u32 %v929, 30
    %v931 = vshll.u32 %v930, 30
    %v932 = vsub.s32 %v928, %v931
    %vm933 = vcmp.lt.s32.totalorder %v932, 0
    %v934 = vsub.s32 0, %v932
    %v935 = vsel %vm933, %v934, %v932
    %v936 = vclz %v935
    %v937 = vsub.s32 %v936, 2
    %vm938 = vcmp.gt.s32.totalorder 0, %v937
    %v939 = vsel %vm938, 0, %v937
    %v940 = vsub.s32 32, %v939
    %v941 = vshll.u32 %v932, %v939
    %v942 = vshrl.u32 %v924, %v940
    %v943 = vor.u32 %v941, %v942
    %v944 = vsub.s32 4294967266, %v939
    %v945 = vadd.s32 %v944, 127
    %v946 = vshll.u32 %v945, 23
    %v947 = vor.u32 4788187, %v946
    %v948 = vand.u32 2147483647, %v947
    %v950 = vcvt.s32.f32 %v943
    %v951 = vmul.f32 %v950, %v948
    %v952 = vxor.u32 %v951, 2147483648
    %v953 = vsel %vm870, %v952, %v951
    %v954 = vsub.s32 4, %v930
    %v955 = vsel %vm870, %v954, %v930
    %v956 = vsel %vm869, %v648, %v953
    %v957 = vsel %vm869, 0, %v955
    %v958 = vcosq.f32.pop %v956
    %v959 = vsinq.f32.pop %v956
    %vm960 = vweird.f32 %v648
    %v961 = vand.u32 %v957, 3
    %vm962 = vcmp.lt.s32.totalorder %v961, 2
    %vm963 = vcmp.eq.s32.totalorder %v961, 0
    %v964 = vxor.u32 %v959, 2147483648
    %v965 = vsel %vm963, %v958, %v964
    %vm966 = vcmp.eq.s32.totalorder %v961, 2
    %v967 = vxor.u32 %v958, 2147483648
    %v968 = vsel %vm966, %v967, %v959
    %v969 = vsel %vm962, %v965, %v968
    %v970 = vsel %vm960, nan, %v969
    %v971 = vand.u32 2147483647, %v649
    %vm972 = vcmp.le.f32.partialorder %v971, 0.7853982
    %vm973 = vcmp.lt.s32.totalorder %v649, 0
    %v974 = vand.u32 %v649, 2139095040
    %v975 = vshrl.u32 %v974, 23
    %v976 = vsub.s32 %v975, 127
    %v977 = vand.u32 2147483647, %v649
    %v978 = vand.u32 %v977, 8388607
    %v979 = vor.u32 %v978, 8388608
    %v980 = vsub.s32 0, %v979
    %v981 = vadd.s32 %v976, 1
    %vm982 = vcmp.gt.s32.totalorder %v981, 0
    %v983 = vsel %vm982, %v981, 0
    %v984 = vshrl.u32 %v983, 5
    %v985 = vand.u32 %v983, 31
    %v986 = vsub.s32 32, %v985
    %v987 = vshrl.u32 683565275, %v986
    %v988 = vshll.u32 683565275, %v985
    %v989 = vshrl.u32 2475754826, %v986
    %v990 = vor.u32 %v988, %v989
    %v991 = vshll.u32 2475754826, %v985
    %v992 = vshrl.u32 2131351028, %v986
    %v993 = vor.u32 %v991, %v992
    %v994 = vshll.u32 2131351028, %v985
    %v995 = vshrl.u32 2102212464, %v986
    %v996 = vor.u32 %v994, %v995
    %v997 = vshll.u32 2102212464, %v985
    %v998 = vshrl.u32 920167782, %v986
    %v999 = vor.u32 %v997, %v998
    %v1000 = vshll.u32 920167782, %v985
    %v1001 = vshrl.u32 1326507024, %v986
    %v1002 = vor.u32 %v1000, %v1001
    %vm1003 = vcmp.lt.s32.totalorder %v984, 1
    %vm1004 = vcmp.lt.s32.totalorder %v984, 2
    %vm1005 = vcmp.lt.s32.totalorder %v984, 3
    %vm1006 = vcmp.lt.s32.totalorder %v984, 4
    %v1007 = vsel %vm1003, %v987, %v990
    %v1008 = vsel %vm1006, %v996, 2102212464
    %v1009 = vsel %vm1005, %v993, %v1008
    %v1010 = vsel %vm1004, %v1007, %v1009
    %v1011 = vsel %vm1003, %v990, %v993
    %v1012 = vsel %vm1006, %v999, 920167782
    %v1013 = vsel %vm1005, %v996, %v1012
    %v1014 = vsel %vm1004, %v1011, %v1013
    %v1015 = vsel %vm1003, %v993, %v996
    %v1016 = vsel %vm1006, %v1002, 1326507024
    %v1017 = vsel %vm1005, %v999, %v1016
    %v1018 = vsel %vm1004, %v1015, %v1017
    %v1019 = vshll.u32 %v979, 8
    %v1020 = vmul.u32.u64.compose %v1019, %v1018
    %v1021 = vextract.low.u32 %v1020
    %v1022 = vextract.high.u32 %v1020
    %v1023 = vmul.u32.u64.compose %v1019, %v1014
    %v1024 = vextract.low.u32 %v1023
    %v1025 = vextract.high.u32 %v1023
    %v1026 = vmul.u32 %v1019, %v1010
    %v1027 = vadd.s32 %v1022, %v1024
    %vm1028 = vc.u32 %v1022, %v1024
    %v1029 = vadd.s32 %v1025, 1
    %v1030 = vsel %vm1028, %v1029, %v1025
    %v1031 = vadd.s32 %v1026, %v1030
    %v1032 = vadd.s32 %v1031, 536870912
    %v1033 = vshrl.u32 %v1032, 30
    %v1034 = vshll.u32 %v1033, 30
    %v1035 = vsub.s32 %v1031, %v1034
    %vm1036 = vcmp.lt.s32.totalorder %v1035, 0
    %v1037 = vsub.s32 0, %v1035
    %v1038 = vsel %vm1036, %v1037, %v1035
    %v1039 = vclz %v1038
    %v1040 = vsub.s32 %v1039, 2
    %vm1041 = vcmp.gt.s32.totalorder 0, %v1040
    %v1042 = vsel %vm1041, 0, %v1040
    %v1043 = vsub.s32 32, %v1042
    %v1044 = vshll.u32 %v1035, %v1042
    %v1045 = vshrl.u32 %v1027, %v1043
    %v1046 = vor.u32 %v1044, %v1045
    %v1047 = vsub.s32 4294967266, %v1042
    %v1048 = vadd.s32 %v1047, 127
    %v1049 = vshll.u32 %v1048, 23
    %v1050 = vor.u32 4788187, %v1049
    %v1051 = vand.u32 2147483647, %v1050
    %v1053 = vcvt.s32.f32 %v1046
    %v1054 = vmul.f32 %v1053, %v1051
    %v1055 = vxor.u32 %v1054, 2147483648
    %v1056 = vsel %vm973, %v1055, %v1054
    %v1057 = vsub.s32 4, %v1033
    %v1058 = vsel %vm973, %v1057, %v1033
    %v1059 = vsel %vm972, %v649, %v1056
    %v1060 = vsel %vm972, 0, %v1058
    %v1061 = vcosq.f32.pop %v1059
    %v1062 = vsinq.f32.pop %v1059
    %vm1063 = vweird.f32 %v649
    %v1064 = vand.u32 %v1060, 3
    %vm1065 = vcmp.lt.s32.totalorder %v1064, 2
    %vm1066 = vcmp.eq.s32.totalorder %v1064, 0
    %v1067 = vxor.u32 %v1062, 2147483648
    %v1068 = vsel %vm1066, %v1061, %v1067
    %vm1069 = vcmp.eq.s32.totalorder %v1064, 2
    %v1070 = vxor.u32 %v1061, 2147483648
    %v1071 = vsel %vm1069, %v1070, %v1062
    %v1072 = vsel %vm1065, %v1068, %v1071
    %v1073 = vsel %vm1063, nan, %v1072
    %v1074 = vand.u32 2147483647, %v650
    %vm1075 = vcmp.le.f32.partialorder %v1074, 0.7853982
    %vm1076 = vcmp.lt.s32.totalorder %v650, 0
    %v1077 = vand.u32 %v650, 2139095040
    %v1078 = vshrl.u32 %v1077, 23
    %v1079 = vsub.s32 %v1078, 127
    %v1080 = vand.u32 2147483647, %v650
    %v1081 = vand.u32 %v1080, 8388607
    %v1082 = vor.u32 %v1081, 8388608
    %v1083 = vsub.s32 0, %v1082
    %v1084 = vadd.s32 %v1079, 1
    %vm1085 = vcmp.gt.s32.totalorder %v1084, 0
    %v1086 = vsel %vm1085, %v1084, 0
    %v1087 = vshrl.u32 %v1086, 5
    %v1088 = vand.u32 %v1086, 31
    %v1089 = vsub.s32 32, %v1088
    %v1090 = vshrl.u32 683565275, %v1089
    %v1091 = vshll.u32 683565275, %v1088
    %v1092 = vshrl.u32 2475754826, %v1089
    %v1093 = vor.u32 %v1091, %v1092
    %v1094 = vshll.u32 2475754826, %v1088
    %v1095 = vshrl.u32 2131351028, %v1089
    %v1096 = vor.u32 %v1094, %v1095
    %v1097 = vshll.u32 2131351028, %v1088
    %v1098 = vshrl.u32 2102212464, %v1089
    %v1099 = vor.u32 %v1097, %v1098
    %v1100 = vshll.u32 2102212464, %v1088
    %v1101 = vshrl.u32 920167782, %v1089
    %v1102 = vor.u32 %v1100, %v1101
    %v1103 = vshll.u32 920167782, %v1088
    %v1104 = vshrl.u32 1326507024, %v1089
    %v1105 = vor.u32 %v1103, %v1104
    %vm1106 = vcmp.lt.s32.totalorder %v1087, 1
    %vm1107 = vcmp.lt.s32.totalorder %v1087, 2
    %vm1108 = vcmp.lt.s32.totalorder %v1087, 3
    %vm1109 = vcmp.lt.s32.totalorder %v1087, 4
    %v1110 = vsel %vm1106, %v1090, %v1093
    %v1111 = vsel %vm1109, %v1099, 2102212464
    %v1112 = vsel %vm1108, %v1096, %v1111
    %v1113 = vsel %vm1107, %v1110, %v1112
    %v1114 = vsel %vm1106, %v1093, %v1096
    %v1115 = vsel %vm1109, %v1102, 920167782
    %v1116 = vsel %vm1108, %v1099, %v1115
    %v1117 = vsel %vm1107, %v1114, %v1116
    %v1118 = vsel %vm1106, %v1096, %v1099
    %v1119 = vsel %vm1109, %v1105, 1326507024
    %v1120 = vsel %vm1108, %v1102, %v1119
    %v1121 = vsel %vm1107, %v1118, %v1120
    %v1122 = vshll.u32 %v1082, 8
    %v1123 = vmul.u32.u64.compose %v1122, %v1121
    %v1124 = vextract.low.u32 %v1123
    %v1125 = vextract.high.u32 %v1123
    %v1126 = vmul.u32.u64.compose %v1122, %v1117
    %v1127 = vextract.low.u32 %v1126
    %v1128 = vextract.high.u32 %v1126
    %v1129 = vmul.u32 %v1122, %v1113
    %v1130 = vadd.s32 %v1125, %v1127
    %vm1131 = vc.u32 %v1125, %v1127
    %v1132 = vadd.s32 %v1128, 1
    %v1133 = vsel %vm1131, %v1132, %v1128
    %v1134 = vadd.s32 %v1129, %v1133
    %v1135 = vadd.s32 %v1134, 536870912
    %v1136 = vshrl.u32 %v1135, 30
    %v1137 = vshll.u32 %v1136, 30
    %v1138 = vsub.s32 %v1134, %v1137
    %vm1139 = vcmp.lt.s32.totalorder %v1138, 0
    %v1140 = vsub.s32 0, %v1138
    %v1141 = vsel %vm1139, %v1140, %v1138
    %v1142 = vclz %v1141
    %v1143 = vsub.s32 %v1142, 2
    %vm1144 = vcmp.gt.s32.totalorder 0, %v1143
    %v1145 = vsel %vm1144, 0, %v1143
    %v1146 = vsub.s32 32, %v1145
    %v1147 = vshll.u32 %v1138, %v1145
    %v1148 = vshrl.u32 %v1130, %v1146
    %v1149 = vor.u32 %v1147, %v1148
    %v1150 = vsub.s32 4294967266, %v1145
    %v1151 = vadd.s32 %v1150, 127
    %v1152 = vshll.u32 %v1151, 23
    %v1153 = vor.u32 4788187, %v1152
    %v1154 = vand.u32 2147483647, %v1153
    %v1156 = vcvt.s32.f32 %v1149
    %v1157 = vmul.f32 %v1156, %v1154
    %v1158 = vxor.u32 %v1157, 2147483648
    %v1159 = vsel %vm1076, %v1158, %v1157
    %v1160 = vsub.s32 4, %v1136
    %v1161 = vsel %vm1076, %v1160, %v1136
    %v1162 = vsel %vm1075, %v650, %v1159
    %v1163 = vsel %vm1075, 0, %v1161
    %v1164 = vcosq.f32.pop %v1162
    %v1165 = vsinq.f32.pop %v1162
    %vm1166 = vweird.f32 %v650
    %v1167 = vand.u32 %v1163, 3
    %vm1168 = vcmp.lt.s32.totalorder %v1167, 2
    %vm1169 = vcmp.eq.s32.totalorder %v1167, 0
    %v1170 = vxor.u32 %v1165, 2147483648
    %v1171 = vsel %vm1169, %v1164, %v1170
    %vm1172 = vcmp.eq.s32.totalorder %v1167, 2
    %v1173 = vxor.u32 %v1164, 2147483648
    %v1174 = vsel %vm1172, %v1173, %v1165
    %v1175 = vsel %vm1168, %v1171, %v1174
    %v1176 = vsel %vm1166, nan, %v1175
    %v1177 = vand.u32 2147483647, %v651
    %vm1178 = vcmp.le.f32.partialorder %v1177, 0.7853982
    %vm1179 = vcmp.lt.s32.totalorder %v651, 0
    %v1180 = vand.u32 %v651, 2139095040
    %v1181 = vshrl.u32 %v1180, 23
    %v1182 = vsub.s32 %v1181, 127
    %v1183 = vand.u32 2147483647, %v651
    %v1184 = vand.u32 %v1183, 8388607
    %v1185 = vor.u32 %v1184, 8388608
    %v1186 = vsub.s32 0, %v1185
    %v1187 = vadd.s32 %v1182, 1
    %vm1188 = vcmp.gt.s32.totalorder %v1187, 0
    %v1189 = vsel %vm1188, %v1187, 0
    %v1190 = vshrl.u32 %v1189, 5
    %v1191 = vand.u32 %v1189, 31
    %v1192 = vsub.s32 32, %v1191
    %v1193 = vshrl.u32 683565275, %v1192
    %v1194 = vshll.u32 683565275, %v1191
    %v1195 = vshrl.u32 2475754826, %v1192
    %v1196 = vor.u32 %v1194, %v1195
    %v1197 = vshll.u32 2475754826, %v1191
    %v1198 = vshrl.u32 2131351028, %v1192
    %v1199 = vor.u32 %v1197, %v1198
    %v1200 = vshll.u32 2131351028, %v1191
    %v1201 = vshrl.u32 2102212464, %v1192
    %v1202 = vor.u32 %v1200, %v1201
    %v1203 = vshll.u32 2102212464, %v1191
    %v1204 = vshrl.u32 920167782, %v1192
    %v1205 = vor.u32 %v1203, %v1204
    %v1206 = vshll.u32 920167782, %v1191
    %v1207 = vshrl.u32 1326507024, %v1192
    %v1208 = vor.u32 %v1206, %v1207
    %vm1209 = vcmp.lt.s32.totalorder %v1190, 1
    %vm1210 = vcmp.lt.s32.totalorder %v1190, 2
    %vm1211 = vcmp.lt.s32.totalorder %v1190, 3
    %vm1212 = vcmp.lt.s32.totalorder %v1190, 4
    %v1213 = vsel %vm1209, %v1193, %v1196
    %v1214 = vsel %vm1212, %v1202, 2102212464
    %v1215 = vsel %vm1211, %v1199, %v1214
    %v1216 = vsel %vm1210, %v1213, %v1215
    %v1217 = vsel %vm1209, %v1196, %v1199
    %v1218 = vsel %vm1212, %v1205, 920167782
    %v1219 = vsel %vm1211, %v1202, %v1218
    %v1220 = vsel %vm1210, %v1217, %v1219
    %v1221 = vsel %vm1209, %v1199, %v1202
    %v1222 = vsel %vm1212, %v1208, 1326507024
    %v1223 = vsel %vm1211, %v1205, %v1222
    %v1224 = vsel %vm1210, %v1221, %v1223
    %v1225 = vshll.u32 %v1185, 8
    %v1226 = vmul.u32.u64.compose %v1225, %v1224
    %v1227 = vextract.low.u32 %v1226
    %v1228 = vextract.high.u32 %v1226
    %v1229 = vmul.u32.u64.compose %v1225, %v1220
    %v1230 = vextract.low.u32 %v1229
    %v1231 = vextract.high.u32 %v1229
    %v1232 = vmul.u32 %v1225, %v1216
    %v1233 = vadd.s32 %v1228, %v1230
    %vm1234 = vc.u32 %v1228, %v1230
    %v1235 = vadd.s32 %v1231, 1
    %v1236 = vsel %vm1234, %v1235, %v1231
    %v1237 = vadd.s32 %v1232, %v1236
    %v1238 = vadd.s32 %v1237, 536870912
    %v1239 = vshrl.u32 %v1238, 30
    %v1240 = vshll.u32 %v1239, 30
    %v1241 = vsub.s32 %v1237, %v1240
    %vm1242 = vcmp.lt.s32.totalorder %v1241, 0
    %v1243 = vsub.s32 0, %v1241
    %v1244 = vsel %vm1242, %v1243, %v1241
    %v1245 = vclz %v1244
    %v1246 = vsub.s32 %v1245, 2
    %vm1247 = vcmp.gt.s32.totalorder 0, %v1246
    %v1248 = vsel %vm1247, 0, %v1246
    %v1249 = vsub.s32 32, %v1248
    %v1250 = vshll.u32 %v1241, %v1248
    %v1251 = vshrl.u32 %v1233, %v1249
    %v1252 = vor.u32 %v1250, %v1251
    %v1253 = vsub.s32 4294967266, %v1248
    %v1254 = vadd.s32 %v1253, 127
    %v1255 = vshll.u32 %v1254, 23
    %v1256 = vor.u32 4788187, %v1255
    %v1257 = vand.u32 2147483647, %v1256
    %v1259 = vcvt.s32.f32 %v1252
    %v1260 = vmul.f32 %v1259, %v1257
    %v1261 = vxor.u32 %v1260, 2147483648
    %v1262 = vsel %vm1179, %v1261, %v1260
    %v1263 = vsub.s32 4, %v1239
    %v1264 = vsel %vm1179, %v1263, %v1239
    %v1265 = vsel %vm1178, %v651, %v1262
    %v1266 = vsel %vm1178, 0, %v1264
    %v1267 = vcosq.f32.pop %v1265
    %v1268 = vsinq.f32.pop %v1265
    %vm1269 = vweird.f32 %v651
    %v1270 = vand.u32 %v1266, 3
    %vm1271 = vcmp.lt.s32.totalorder %v1270, 2
    %vm1272 = vcmp.eq.s32.totalorder %v1270, 0
    %v1273 = vxor.u32 %v1268, 2147483648
    %v1274 = vsel %vm1272, %v1267, %v1273
    %vm1275 = vcmp.eq.s32.totalorder %v1270, 2
    %v1276 = vxor.u32 %v1267, 2147483648
    %v1277 = vsel %vm1275, %v1276, %v1268
    %v1278 = vsel %vm1271, %v1274, %v1277
    %v1279 = vsel %vm1269, nan, %v1278
    %v1280 = vand.u32 2147483647, %v652
    %vm1281 = vcmp.le.f32.partialorder %v1280, 0.7853982
    %vm1282 = vcmp.lt.s32.totalorder %v652, 0
    %v1283 = vand.u32 %v652, 2139095040
    %v1284 = vshrl.u32 %v1283, 23
    %v1285 = vsub.s32 %v1284, 127
    %v1286 = vand.u32 2147483647, %v652
    %v1287 = vand.u32 %v1286, 8388607
    %v1288 = vor.u32 %v1287, 8388608
    %v1289 = vsub.s32 0, %v1288
    %v1290 = vadd.s32 %v1285, 1
    %vm1291 = vcmp.gt.s32.totalorder %v1290, 0
    %v1292 = vsel %vm1291, %v1290, 0
    %v1293 = vshrl.u32 %v1292, 5
    %v1294 = vand.u32 %v1292, 31
    %v1295 = vsub.s32 32, %v1294
    %v1296 = vshrl.u32 683565275, %v1295
    %v1297 = vshll.u32 683565275, %v1294
    %v1298 = vshrl.u32 2475754826, %v1295
    %v1299 = vor.u32 %v1297, %v1298
    %v1300 = vshll.u32 2475754826, %v1294
    %v1301 = vshrl.u32 2131351028, %v1295
    %v1302 = vor.u32 %v1300, %v1301
    %v1303 = vshll.u32 2131351028, %v1294
    %v1304 = vshrl.u32 2102212464, %v1295
    %v1305 = vor.u32 %v1303, %v1304
    %v1306 = vshll.u32 2102212464, %v1294
    %v1307 = vshrl.u32 920167782, %v1295
    %v1308 = vor.u32 %v1306, %v1307
    %v1309 = vshll.u32 920167782, %v1294
    %v1310 = vshrl.u32 1326507024, %v1295
    %v1311 = vor.u32 %v1309, %v1310
    %vm1312 = vcmp.lt.s32.totalorder %v1293, 1
    %vm1313 = vcmp.lt.s32.totalorder %v1293, 2
    %vm1314 = vcmp.lt.s32.totalorder %v1293, 3
    %vm1315 = vcmp.lt.s32.totalorder %v1293, 4
    %v1316 = vsel %vm1312, %v1296, %v1299
    %v1317 = vsel %vm1315, %v1305, 2102212464
    %v1318 = vsel %vm1314, %v1302, %v1317
    %v1319 = vsel %vm1313, %v1316, %v1318
    %v1320 = vsel %vm1312, %v1299, %v1302
    %v1321 = vsel %vm1315, %v1308, 920167782
    %v1322 = vsel %vm1314, %v1305, %v1321
    %v1323 = vsel %vm1313, %v1320, %v1322
    %v1324 = vsel %vm1312, %v1302, %v1305
    %v1325 = vsel %vm1315, %v1311, 1326507024
    %v1326 = vsel %vm1314, %v1308, %v1325
    %v1327 = vsel %vm1313, %v1324, %v1326
    %v1328 = vshll.u32 %v1288, 8
    %v1329 = vmul.u32.u64.compose %v1328, %v1327
    %v1330 = vextract.low.u32 %v1329
    %v1331 = vextract.high.u32 %v1329
    %v1332 = vmul.u32.u64.compose %v1328, %v1323
    %v1333 = vextract.low.u32 %v1332
    %v1334 = vextract.high.u32 %v1332
    %v1335 = vmul.u32 %v1328, %v1319
    %v1336 = vadd.s32 %v1331, %v1333
    %vm1337 = vc.u32 %v1331, %v1333
    %v1338 = vadd.s32 %v1334, 1
    %v1339 = vsel %vm1337, %v1338, %v1334
    %v1340 = vadd.s32 %v1335, %v1339
    %v1341 = vadd.s32 %v1340, 536870912
    %v1342 = vshrl.u32 %v1341, 30
    %v1343 = vshll.u32 %v1342, 30
    %v1344 = vsub.s32 %v1340, %v1343
    %vm1345 = vcmp.lt.s32.totalorder %v1344, 0
    %v1346 = vsub.s32 0, %v1344
    %v1347 = vsel %vm1345, %v1346, %v1344
    %v1348 = vclz %v1347
    %v1349 = vsub.s32 %v1348, 2
    %vm1350 = vcmp.gt.s32.totalorder 0, %v1349
    %v1351 = vsel %vm1350, 0, %v1349
    %v1352 = vsub.s32 32, %v1351
    %v1353 = vshll.u32 %v1344, %v1351
    %v1354 = vshrl.u32 %v1336, %v1352
    %v1355 = vor.u32 %v1353, %v1354
    %v1356 = vsub.s32 4294967266, %v1351
    %v1357 = vadd.s32 %v1356, 127
    %v1358 = vshll.u32 %v1357, 23
    %v1359 = vor.u32 4788187, %v1358
    %v1360 = vand.u32 2147483647, %v1359
    %v1362 = vcvt.s32.f32 %v1355
    %v1363 = vmul.f32 %v1362, %v1360
    %v1364 = vxor.u32 %v1363, 2147483648
    %v1365 = vsel %vm1282, %v1364, %v1363
    %v1366 = vsub.s32 4, %v1342
    %v1367 = vsel %vm1282, %v1366, %v1342
    %v1368 = vsel %vm1281, %v652, %v1365
    %v1369 = vsel %vm1281, 0, %v1367
    %v1370 = vcosq.f32.pop %v1368
    %v1371 = vsinq.f32.pop %v1368
    %vm1372 = vweird.f32 %v652
    %v1373 = vand.u32 %v1369, 3
    %vm1374 = vcmp.lt.s32.totalorder %v1373, 2
    %vm1375 = vcmp.eq.s32.totalorder %v1373, 0
    %v1376 = vxor.u32 %v1371, 2147483648
    %v1377 = vsel %vm1375, %v1370, %v1376
    %vm1378 = vcmp.eq.s32.totalorder %v1373, 2
    %v1379 = vxor.u32 %v1370, 2147483648
    %v1380 = vsel %vm1378, %v1379, %v1371
    %v1381 = vsel %vm1374, %v1377, %v1380
    %v1382 = vsel %vm1372, nan, %v1381
    %v1383 = vand.u32 2147483647, %v653
    %vm1384 = vcmp.le.f32.partialorder %v1383, 0.7853982
    %vm1385 = vcmp.lt.s32.totalorder %v653, 0
    %v1386 = vand.u32 %v653, 2139095040
    %v1387 = vshrl.u32 %v1386, 23
    %v1388 = vsub.s32 %v1387, 127
    %v1389 = vand.u32 2147483647, %v653
    %v1390 = vand.u32 %v1389, 8388607
    %v1391 = vor.u32 %v1390, 8388608
    %v1392 = vsub.s32 0, %v1391
    %v1393 = vadd.s32 %v1388, 1
    %vm1394 = vcmp.gt.s32.totalorder %v1393, 0
    %v1395 = vsel %vm1394, %v1393, 0
    %v1396 = vshrl.u32 %v1395, 5
    %v1397 = vand.u32 %v1395, 31
    %v1398 = vsub.s32 32, %v1397
    %v1399 = vshrl.u32 683565275, %v1398
    %v1400 = vshll.u32 683565275, %v1397
    %v1401 = vshrl.u32 2475754826, %v1398
    %v1402 = vor.u32 %v1400, %v1401
    %v1403 = vshll.u32 2475754826, %v1397
    %v1404 = vshrl.u32 2131351028, %v1398
    %v1405 = vor.u32 %v1403, %v1404
    %v1406 = vshll.u32 2131351028, %v1397
    %v1407 = vshrl.u32 2102212464, %v1398
    %v1408 = vor.u32 %v1406, %v1407
    %v1409 = vshll.u32 2102212464, %v1397
    %v1410 = vshrl.u32 920167782, %v1398
    %v1411 = vor.u32 %v1409, %v1410
    %v1412 = vshll.u32 920167782, %v1397
    %v1413 = vshrl.u32 1326507024, %v1398
    %v1414 = vor.u32 %v1412, %v1413
    %vm1415 = vcmp.lt.s32.totalorder %v1396, 1
    %vm1416 = vcmp.lt.s32.totalorder %v1396, 2
    %vm1417 = vcmp.lt.s32.totalorder %v1396, 3
    %vm1418 = vcmp.lt.s32.totalorder %v1396, 4
    %v1419 = vsel %vm1415, %v1399, %v1402
    %v1420 = vsel %vm1418, %v1408, 2102212464
    %v1421 = vsel %vm1417, %v1405, %v1420
    %v1422 = vsel %vm1416, %v1419, %v1421
    %v1423 = vsel %vm1415, %v1402, %v1405
    %v1424 = vsel %vm1418, %v1411, 920167782
    %v1425 = vsel %vm1417, %v1408, %v1424
    %v1426 = vsel %vm1416, %v1423, %v1425
    %v1427 = vsel %vm1415, %v1405, %v1408
    %v1428 = vsel %vm1418, %v1414, 1326507024
    %v1429 = vsel %vm1417, %v1411, %v1428
    %v1430 = vsel %vm1416, %v1427, %v1429
    %v1431 = vshll.u32 %v1391, 8
    %v1432 = vmul.u32.u64.compose %v1431, %v1430
    %v1433 = vextract.low.u32 %v1432
    %v1434 = vextract.high.u32 %v1432
    %v1435 = vmul.u32.u64.compose %v1431, %v1426
    %v1436 = vextract.low.u32 %v1435
    %v1437 = vextract.high.u32 %v1435
    %v1438 = vmul.u32 %v1431, %v1422
    %v1439 = vadd.s32 %v1434, %v1436
    %vm1440 = vc.u32 %v1434, %v1436
    %v1441 = vadd.s32 %v1437, 1
    %v1442 = vsel %vm1440, %v1441, %v1437
    %v1443 = vadd.s32 %v1438, %v1442
    %v1444 = vadd.s32 %v1443, 536870912
    %v1445 = vshrl.u32 %v1444, 30
    %v1446 = vshll.u32 %v1445, 30
    %v1447 = vsub.s32 %v1443, %v1446
    %vm1448 = vcmp.lt.s32.totalorder %v1447, 0
    %v1449 = vsub.s32 0, %v1447
    %v1450 = vsel %vm1448, %v1449, %v1447
    %v1451 = vclz %v1450
    %v1452 = vsub.s32 %v1451, 2
    %vm1453 = vcmp.gt.s32.totalorder 0, %v1452
    %v1454 = vsel %vm1453, 0, %v1452
    %v1455 = vsub.s32 32, %v1454
    %v1456 = vshll.u32 %v1447, %v1454
    %v1457 = vshrl.u32 %v1439, %v1455
    %v1458 = vor.u32 %v1456, %v1457
    %v1459 = vsub.s32 4294967266, %v1454
    %v1460 = vadd.s32 %v1459, 127
    %v1461 = vshll.u32 %v1460, 23
    %v1462 = vor.u32 4788187, %v1461
    %v1463 = vand.u32 2147483647, %v1462
    %v1465 = vcvt.s32.f32 %v1458
    %v1466 = vmul.f32 %v1465, %v1463
    %v1467 = vxor.u32 %v1466, 2147483648
    %v1468 = vsel %vm1385, %v1467, %v1466
    %v1469 = vsub.s32 4, %v1445
    %v1470 = vsel %vm1385, %v1469, %v1445
    %v1471 = vsel %vm1384, %v653, %v1468
    %v1472 = vsel %vm1384, 0, %v1470
    %v1473 = vcosq.f32.pop %v1471
    %v1474 = vsinq.f32.pop %v1471
    %vm1475 = vweird.f32 %v653
    %v1476 = vand.u32 %v1472, 3
    %vm1477 = vcmp.lt.s32.totalorder %v1476, 2
    %vm1478 = vcmp.eq.s32.totalorder %v1476, 0
    %v1479 = vxor.u32 %v1474, 2147483648
    %v1480 = vsel %vm1478, %v1473, %v1479
    %vm1481 = vcmp.eq.s32.totalorder %v1476, 2
    %v1482 = vxor.u32 %v1473, 2147483648
    %v1483 = vsel %vm1481, %v1482, %v1474
    %v1484 = vsel %vm1477, %v1480, %v1483
    %v1485 = vsel %vm1475, nan, %v1484
    %v1486 = vand.u32 2147483647, %v654
    %vm1487 = vcmp.le.f32.partialorder %v1486, 0.7853982
    %vm1488 = vcmp.lt.s32.totalorder %v654, 0
    %v1489 = vand.u32 %v654, 2139095040
    %v1490 = vshrl.u32 %v1489, 23
    %v1491 = vsub.s32 %v1490, 127
    %v1492 = vand.u32 2147483647, %v654
    %v1493 = vand.u32 %v1492, 8388607
    %v1494 = vor.u32 %v1493, 8388608
    %v1495 = vsub.s32 0, %v1494
    %v1496 = vadd.s32 %v1491, 1
    %vm1497 = vcmp.gt.s32.totalorder %v1496, 0
    %v1498 = vsel %vm1497, %v1496, 0
    %v1499 = vshrl.u32 %v1498, 5
    %v1500 = vand.u32 %v1498, 31
    %v1501 = vsub.s32 32, %v1500
    %v1502 = vshrl.u32 683565275, %v1501
    %v1503 = vshll.u32 683565275, %v1500
    %v1504 = vshrl.u32 2475754826, %v1501
    %v1505 = vor.u32 %v1503, %v1504
    %v1506 = vshll.u32 2475754826, %v1500
    %v1507 = vshrl.u32 2131351028, %v1501
    %v1508 = vor.u32 %v1506, %v1507
    %v1509 = vshll.u32 2131351028, %v1500
    %v1510 = vshrl.u32 2102212464, %v1501
    %v1511 = vor.u32 %v1509, %v1510
    %v1512 = vshll.u32 2102212464, %v1500
    %v1513 = vshrl.u32 920167782, %v1501
    %v1514 = vor.u32 %v1512, %v1513
    %v1515 = vshll.u32 920167782, %v1500
    %v1516 = vshrl.u32 1326507024, %v1501
    %v1517 = vor.u32 %v1515, %v1516
    %vm1518 = vcmp.lt.s32.totalorder %v1499, 1
    %vm1519 = vcmp.lt.s32.totalorder %v1499, 2
    %vm1520 = vcmp.lt.s32.totalorder %v1499, 3
    %vm1521 = vcmp.lt.s32.totalorder %v1499, 4
    %v1522 = vsel %vm1518, %v1502, %v1505
    %v1523 = vsel %vm1521, %v1511, 2102212464
    %v1524 = vsel %vm1520, %v1508, %v1523
    %v1525 = vsel %vm1519, %v1522, %v1524
    %v1526 = vsel %vm1518, %v1505, %v1508
    %v1527 = vsel %vm1521, %v1514, 920167782
    %v1528 = vsel %vm1520, %v1511, %v1527
    %v1529 = vsel %vm1519, %v1526, %v1528
    %v1530 = vsel %vm1518, %v1508, %v1511
    %v1531 = vsel %vm1521, %v1517, 1326507024
    %v1532 = vsel %vm1520, %v1514, %v1531
    %v1533 = vsel %vm1519, %v1530, %v1532
    %v1534 = vshll.u32 %v1494, 8
    %v1535 = vmul.u32.u64.compose %v1534, %v1533
    %v1536 = vextract.low.u32 %v1535
    %v1537 = vextract.high.u32 %v1535
    %v1538 = vmul.u32.u64.compose %v1534, %v1529
    %v1539 = vextract.low.u32 %v1538
    %v1540 = vextract.high.u32 %v1538
    %v1541 = vmul.u32 %v1534, %v1525
    %v1542 = vadd.s32 %v1537, %v1539
    %vm1543 = vc.u32 %v1537, %v1539
    %v1544 = vadd.s32 %v1540, 1
    %v1545 = vsel %vm1543, %v1544, %v1540
    %v1546 = vadd.s32 %v1541, %v1545
    %v1547 = vadd.s32 %v1546, 536870912
    %v1548 = vshrl.u32 %v1547, 30
    %v1549 = vshll.u32 %v1548, 30
    %v1550 = vsub.s32 %v1546, %v1549
    %vm1551 = vcmp.lt.s32.totalorder %v1550, 0
    %v1552 = vsub.s32 0, %v1550
    %v1553 = vsel %vm1551, %v1552, %v1550
    %v1554 = vclz %v1553
    %v1555 = vsub.s32 %v1554, 2
    %vm1556 = vcmp.gt.s32.totalorder 0, %v1555
    %v1557 = vsel %vm1556, 0, %v1555
    %v1558 = vsub.s32 32, %v1557
    %v1559 = vshll.u32 %v1550, %v1557
    %v1560 = vshrl.u32 %v1542, %v1558
    %v1561 = vor.u32 %v1559, %v1560
    %v1562 = vsub.s32 4294967266, %v1557
    %v1563 = vadd.s32 %v1562, 127
    %v1564 = vshll.u32 %v1563, 23
    %v1565 = vor.u32 4788187, %v1564
    %v1566 = vand.u32 2147483647, %v1565
    %v1568 = vcvt.s32.f32 %v1561
    %v1569 = vmul.f32 %v1568, %v1566
    %v1570 = vxor.u32 %v1569, 2147483648
    %v1571 = vsel %vm1488, %v1570, %v1569
    %v1572 = vsub.s32 4, %v1548
    %v1573 = vsel %vm1488, %v1572, %v1548
    %v1574 = vsel %vm1487, %v654, %v1571
    %v1575 = vsel %vm1487, 0, %v1573
    %v1576 = vcosq.f32.pop %v1574
    %v1577 = vsinq.f32.pop %v1574
    %vm1578 = vweird.f32 %v654
    %v1579 = vand.u32 %v1575, 3
    %vm1580 = vcmp.lt.s32.totalorder %v1579, 2
    %vm1581 = vcmp.eq.s32.totalorder %v1579, 0
    %v1582 = vxor.u32 %v1577, 2147483648
    %v1583 = vsel %vm1581, %v1576, %v1582
    %vm1584 = vcmp.eq.s32.totalorder %v1579, 2
    %v1585 = vxor.u32 %v1576, 2147483648
    %v1586 = vsel %vm1584, %v1585, %v1577
    %v1587 = vsel %vm1580, %v1583, %v1586
    %v1588 = vsel %vm1578, nan, %v1587
    %v1589 = vand.u32 2147483647, %v655
    %vm1590 = vcmp.le.f32.partialorder %v1589, 0.7853982
    %vm1591 = vcmp.lt.s32.totalorder %v655, 0
    %v1592 = vand.u32 %v655, 2139095040
    %v1593 = vshrl.u32 %v1592, 23
    %v1594 = vsub.s32 %v1593, 127
    %v1595 = vand.u32 2147483647, %v655
    %v1596 = vand.u32 %v1595, 8388607
    %v1597 = vor.u32 %v1596, 8388608
    %v1598 = vsub.s32 0, %v1597
    %v1599 = vadd.s32 %v1594, 1
    %vm1600 = vcmp.gt.s32.totalorder %v1599, 0
    %v1601 = vsel %vm1600, %v1599, 0
    %v1602 = vshrl.u32 %v1601, 5
    %v1603 = vand.u32 %v1601, 31
    %v1604 = vsub.s32 32, %v1603
    %v1605 = vshrl.u32 683565275, %v1604
    %v1606 = vshll.u32 683565275, %v1603
    %v1607 = vshrl.u32 2475754826, %v1604
    %v1608 = vor.u32 %v1606, %v1607
    %v1609 = vshll.u32 2475754826, %v1603
    %v1610 = vshrl.u32 2131351028, %v1604
    %v1611 = vor.u32 %v1609, %v1610
    %v1612 = vshll.u32 2131351028, %v1603
    %v1613 = vshrl.u32 2102212464, %v1604
    %v1614 = vor.u32 %v1612, %v1613
    %v1615 = vshll.u32 2102212464, %v1603
    %v1616 = vshrl.u32 920167782, %v1604
    %v1617 = vor.u32 %v1615, %v1616
    %v1618 = vshll.u32 920167782, %v1603
    %v1619 = vshrl.u32 1326507024, %v1604
    %v1620 = vor.u32 %v1618, %v1619
    %vm1621 = vcmp.lt.s32.totalorder %v1602, 1
    %vm1622 = vcmp.lt.s32.totalorder %v1602, 2
    %vm1623 = vcmp.lt.s32.totalorder %v1602, 3
    %vm1624 = vcmp.lt.s32.totalorder %v1602, 4
    %v1625 = vsel %vm1621, %v1605, %v1608
    %v1626 = vsel %vm1624, %v1614, 2102212464
    %v1627 = vsel %vm1623, %v1611, %v1626
    %v1628 = vsel %vm1622, %v1625, %v1627
    %v1629 = vsel %vm1621, %v1608, %v1611
    %v1630 = vsel %vm1624, %v1617, 920167782
    %v1631 = vsel %vm1623, %v1614, %v1630
    %v1632 = vsel %vm1622, %v1629, %v1631
    %v1633 = vsel %vm1621, %v1611, %v1614
    %v1634 = vsel %vm1624, %v1620, 1326507024
    %v1635 = vsel %vm1623, %v1617, %v1634
    %v1636 = vsel %vm1622, %v1633, %v1635
    %v1637 = vshll.u32 %v1597, 8
    %v1638 = vmul.u32.u64.compose %v1637, %v1636
    %v1639 = vextract.low.u32 %v1638
    %v1640 = vextract.high.u32 %v1638
    %v1641 = vmul.u32.u64.compose %v1637, %v1632
    %v1642 = vextract.low.u32 %v1641
    %v1643 = vextract.high.u32 %v1641
    %v1644 = vmul.u32 %v1637, %v1628
    %v1645 = vadd.s32 %v1640, %v1642
    %vm1646 = vc.u32 %v1640, %v1642
    %v1647 = vadd.s32 %v1643, 1
    %v1648 = vsel %vm1646, %v1647, %v1643
    %v1649 = vadd.s32 %v1644, %v1648
    %v1650 = vadd.s32 %v1649, 536870912
    %v1651 = vshrl.u32 %v1650, 30
    %v1652 = vshll.u32 %v1651, 30
    %v1653 = vsub.s32 %v1649, %v1652
    %vm1654 = vcmp.lt.s32.totalorder %v1653, 0
    %v1655 = vsub.s32 0, %v1653
    %v1656 = vsel %vm1654, %v1655, %v1653
    %v1657 = vclz %v1656
    %v1658 = vsub.s32 %v1657, 2
    %vm1659 = vcmp.gt.s32.totalorder 0, %v1658
    %v1660 = vsel %vm1659, 0, %v1658
    %v1661 = vsub.s32 32, %v1660
    %v1662 = vshll.u32 %v1653, %v1660
    %v1663 = vshrl.u32 %v1645, %v1661
    %v1664 = vor.u32 %v1662, %v1663
    %v1665 = vsub.s32 4294967266, %v1660
    %v1666 = vadd.s32 %v1665, 127
    %v1667 = vshll.u32 %v1666, 23
    %v1668 = vor.u32 4788187, %v1667
    %v1669 = vand.u32 2147483647, %v1668
    %v1671 = vcvt.s32.f32 %v1664
    %v1672 = vmul.f32 %v1671, %v1669
    %v1673 = vxor.u32 %v1672, 2147483648
    %v1674 = vsel %vm1591, %v1673, %v1672
    %v1675 = vsub.s32 4, %v1651
    %v1676 = vsel %vm1591, %v1675, %v1651
    %v1677 = vsel %vm1590, %v655, %v1674
    %v1678 = vsel %vm1590, 0, %v1676
    %v1679 = vcosq.f32.pop %v1677
    %v1680 = vsinq.f32.pop %v1677
    %vm1681 = vweird.f32 %v655
    %v1682 = vand.u32 %v1678, 3
    %vm1683 = vcmp.lt.s32.totalorder %v1682, 2
    %vm1684 = vcmp.eq.s32.totalorder %v1682, 0
    %v1685 = vxor.u32 %v1680, 2147483648
    %v1686 = vsel %vm1684, %v1679, %v1685
    %vm1687 = vcmp.eq.s32.totalorder %v1682, 2
    %v1688 = vxor.u32 %v1679, 2147483648
    %v1689 = vsel %vm1687, %v1688, %v1680
    %v1690 = vsel %vm1683, %v1686, %v1689
    %v1691 = vsel %vm1681, nan, %v1690
    %v1692 = vand.u32 2147483647, %v656
    %vm1693 = vcmp.le.f32.partialorder %v1692, 0.7853982
    %vm1694 = vcmp.lt.s32.totalorder %v656, 0
    %v1695 = vand.u32 %v656, 2139095040
    %v1696 = vshrl.u32 %v1695, 23
    %v1697 = vsub.s32 %v1696, 127
    %v1698 = vand.u32 2147483647, %v656
    %v1699 = vand.u32 %v1698, 8388607
    %v1700 = vor.u32 %v1699, 8388608
    %v1701 = vsub.s32 0, %v1700
    %v1702 = vadd.s32 %v1697, 1
    %vm1703 = vcmp.gt.s32.totalorder %v1702, 0
    %v1704 = vsel %vm1703, %v1702, 0
    %v1705 = vshrl.u32 %v1704, 5
    %v1706 = vand.u32 %v1704, 31
    %v1707 = vsub.s32 32, %v1706
    %v1708 = vshrl.u32 683565275, %v1707
    %v1709 = vshll.u32 683565275, %v1706
    %v1710 = vshrl.u32 2475754826, %v1707
    %v1711 = vor.u32 %v1709, %v1710
    %v1712 = vshll.u32 2475754826, %v1706
    %v1713 = vshrl.u32 2131351028, %v1707
    %v1714 = vor.u32 %v1712, %v1713
    %v1715 = vshll.u32 2131351028, %v1706
    %v1716 = vshrl.u32 2102212464, %v1707
    %v1717 = vor.u32 %v1715, %v1716
    %v1718 = vshll.u32 2102212464, %v1706
    %v1719 = vshrl.u32 920167782, %v1707
    %v1720 = vor.u32 %v1718, %v1719
    %v1721 = vshll.u32 920167782, %v1706
    %v1722 = vshrl.u32 1326507024, %v1707
    %v1723 = vor.u32 %v1721, %v1722
    %vm1724 = vcmp.lt.s32.totalorder %v1705, 1
    %vm1725 = vcmp.lt.s32.totalorder %v1705, 2
    %vm1726 = vcmp.lt.s32.totalorder %v1705, 3
    %vm1727 = vcmp.lt.s32.totalorder %v1705, 4
    %v1728 = vsel %vm1724, %v1708, %v1711
    %v1729 = vsel %vm1727, %v1717, 2102212464
    %v1730 = vsel %vm1726, %v1714, %v1729
    %v1731 = vsel %vm1725, %v1728, %v1730
    %v1732 = vsel %vm1724, %v1711, %v1714
    %v1733 = vsel %vm1727, %v1720, 920167782
    %v1734 = vsel %vm1726, %v1717, %v1733
    %v1735 = vsel %vm1725, %v1732, %v1734
    %v1736 = vsel %vm1724, %v1714, %v1717
    %v1737 = vsel %vm1727, %v1723, 1326507024
    %v1738 = vsel %vm1726, %v1720, %v1737
    %v1739 = vsel %vm1725, %v1736, %v1738
    %v1740 = vshll.u32 %v1700, 8
    %v1741 = vmul.u32.u64.compose %v1740, %v1739
    %v1742 = vextract.low.u32 %v1741
    %v1743 = vextract.high.u32 %v1741
    %v1744 = vmul.u32.u64.compose %v1740, %v1735
    %v1745 = vextract.low.u32 %v1744
    %v1746 = vextract.high.u32 %v1744
    %v1747 = vmul.u32 %v1740, %v1731
    %v1748 = vadd.s32 %v1743, %v1745
    %vm1749 = vc.u32 %v1743, %v1745
    %v1750 = vadd.s32 %v1746, 1
    %v1751 = vsel %vm1749, %v1750, %v1746
    %v1752 = vadd.s32 %v1747, %v1751
    %v1753 = vadd.s32 %v1752, 536870912
    %v1754 = vshrl.u32 %v1753, 30
    %v1755 = vshll.u32 %v1754, 30
    %v1756 = vsub.s32 %v1752, %v1755
    %vm1757 = vcmp.lt.s32.totalorder %v1756, 0
    %v1758 = vsub.s32 0, %v1756
    %v1759 = vsel %vm1757, %v1758, %v1756
    %v1760 = vclz %v1759
    %v1761 = vsub.s32 %v1760, 2
    %vm1762 = vcmp.gt.s32.totalorder 0, %v1761
    %v1763 = vsel %vm1762, 0, %v1761
    %v1764 = vsub.s32 32, %v1763
    %v1765 = vshll.u32 %v1756, %v1763
    %v1766 = vshrl.u32 %v1748, %v1764
    %v1767 = vor.u32 %v1765, %v1766
    %v1768 = vsub.s32 4294967266, %v1763
    %v1769 = vadd.s32 %v1768, 127
    %v1770 = vshll.u32 %v1769, 23
    %v1771 = vor.u32 4788187, %v1770
    %v1772 = vand.u32 2147483647, %v1771
    %v1774 = vcvt.s32.f32 %v1767
    %v1775 = vmul.f32 %v1774, %v1772
    %v1776 = vxor.u32 %v1775, 2147483648
    %v1777 = vsel %vm1694, %v1776, %v1775
    %v1778 = vsub.s32 4, %v1754
    %v1779 = vsel %vm1694, %v1778, %v1754
    %v1780 = vsel %vm1693, %v656, %v1777
    %v1781 = vsel %vm1693, 0, %v1779
    %v1782 = vcosq.f32.pop %v1780
    %v1783 = vsinq.f32.pop %v1780
    %vm1784 = vweird.f32 %v656
    %v1785 = vand.u32 %v1781, 3
    %vm1786 = vcmp.lt.s32.totalorder %v1785, 2
    %vm1787 = vcmp.eq.s32.totalorder %v1785, 0
    %v1788 = vxor.u32 %v1783, 2147483648
    %v1789 = vsel %vm1787, %v1782, %v1788
    %vm1790 = vcmp.eq.s32.totalorder %v1785, 2
    %v1791 = vxor.u32 %v1782, 2147483648
    %v1792 = vsel %vm1790, %v1791, %v1783
    %v1793 = vsel %vm1786, %v1789, %v1792
    %v1794 = vsel %vm1784, nan, %v1793
    %v1795 = vand.u32 2147483647, %v657
    %vm1796 = vcmp.le.f32.partialorder %v1795, 0.7853982
    %vm1797 = vcmp.lt.s32.totalorder %v657, 0
    %v1798 = vand.u32 %v657, 2139095040
    %v1799 = vshrl.u32 %v1798, 23
    %v1800 = vsub.s32 %v1799, 127
    %v1801 = vand.u32 2147483647, %v657
    %v1802 = vand.u32 %v1801, 8388607
    %v1803 = vor.u32 %v1802, 8388608
    %v1804 = vsub.s32 0, %v1803
    %v1805 = vadd.s32 %v1800, 1
    %vm1806 = vcmp.gt.s32.totalorder %v1805, 0
    %v1807 = vsel %vm1806, %v1805, 0
    %v1808 = vshrl.u32 %v1807, 5
    %v1809 = vand.u32 %v1807, 31
    %v1810 = vsub.s32 32, %v1809
    %v1811 = vshrl.u32 683565275, %v1810
    %v1812 = vshll.u32 683565275, %v1809
    %v1813 = vshrl.u32 2475754826, %v1810
    %v1814 = vor.u32 %v1812, %v1813
    %v1815 = vshll.u32 2475754826, %v1809
    %v1816 = vshrl.u32 2131351028, %v1810
    %v1817 = vor.u32 %v1815, %v1816
    %v1818 = vshll.u32 2131351028, %v1809
    %v1819 = vshrl.u32 2102212464, %v1810
    %v1820 = vor.u32 %v1818, %v1819
    %v1821 = vshll.u32 2102212464, %v1809
    %v1822 = vshrl.u32 920167782, %v1810
    %v1823 = vor.u32 %v1821, %v1822
    %v1824 = vshll.u32 920167782, %v1809
    %v1825 = vshrl.u32 1326507024, %v1810
    %v1826 = vor.u32 %v1824, %v1825
    %vm1827 = vcmp.lt.s32.totalorder %v1808, 1
    %vm1828 = vcmp.lt.s32.totalorder %v1808, 2
    %vm1829 = vcmp.lt.s32.totalorder %v1808, 3
    %vm1830 = vcmp.lt.s32.totalorder %v1808, 4
    %v1831 = vsel %vm1827, %v1811, %v1814
    %v1832 = vsel %vm1830, %v1820, 2102212464
    %v1833 = vsel %vm1829, %v1817, %v1832
    %v1834 = vsel %vm1828, %v1831, %v1833
    %v1835 = vsel %vm1827, %v1814, %v1817
    %v1836 = vsel %vm1830, %v1823, 920167782
    %v1837 = vsel %vm1829, %v1820, %v1836
    %v1838 = vsel %vm1828, %v1835, %v1837
    %v1839 = vsel %vm1827, %v1817, %v1820
    %v1840 = vsel %vm1830, %v1826, 1326507024
    %v1841 = vsel %vm1829, %v1823, %v1840
    %v1842 = vsel %vm1828, %v1839, %v1841
    %v1843 = vshll.u32 %v1803, 8
    %v1844 = vmul.u32.u64.compose %v1843, %v1842
    %v1845 = vextract.low.u32 %v1844
    %v1846 = vextract.high.u32 %v1844
    %v1847 = vmul.u32.u64.compose %v1843, %v1838
    %v1848 = vextract.low.u32 %v1847
    %v1849 = vextract.high.u32 %v1847
    %v1850 = vmul.u32 %v1843, %v1834
    %v1851 = vadd.s32 %v1846, %v1848
    %vm1852 = vc.u32 %v1846, %v1848
    %v1853 = vadd.s32 %v1849, 1
    %v1854 = vsel %vm1852, %v1853, %v1849
    %v1855 = vadd.s32 %v1850, %v1854
    %v1856 = vadd.s32 %v1855, 536870912
    %v1857 = vshrl.u32 %v1856, 30
    %v1858 = vshll.u32 %v1857, 30
    %v1859 = vsub.s32 %v1855, %v1858
    %vm1860 = vcmp.lt.s32.totalorder %v1859, 0
    %v1861 = vsub.s32 0, %v1859
    %v1862 = vsel %vm1860, %v1861, %v1859
    %v1863 = vclz %v1862
    %v1864 = vsub.s32 %v1863, 2
    %vm1865 = vcmp.gt.s32.totalorder 0, %v1864
    %v1866 = vsel %vm1865, 0, %v1864
    %v1867 = vsub.s32 32, %v1866
    %v1868 = vshll.u32 %v1859, %v1866
    %v1869 = vshrl.u32 %v1851, %v1867
    %v1870 = vor.u32 %v1868, %v1869
    %v1871 = vsub.s32 4294967266, %v1866
    %v1872 = vadd.s32 %v1871, 127
    %v1873 = vshll.u32 %v1872, 23
    %v1874 = vor.u32 4788187, %v1873
    %v1875 = vand.u32 2147483647, %v1874
    %v1877 = vcvt.s32.f32 %v1870
    %v1878 = vmul.f32 %v1877, %v1875
    %v1879 = vxor.u32 %v1878, 2147483648
    %v1880 = vsel %vm1797, %v1879, %v1878
    %v1881 = vsub.s32 4, %v1857
    %v1882 = vsel %vm1797, %v1881, %v1857
    %v1883 = vsel %vm1796, %v657, %v1880
    %v1884 = vsel %vm1796, 0, %v1882
    %v1885 = vcosq.f32.pop %v1883
    %v1886 = vsinq.f32.pop %v1883
    %vm1887 = vweird.f32 %v657
    %v1888 = vand.u32 %v1884, 3
    %vm1889 = vcmp.lt.s32.totalorder %v1888, 2
    %vm1890 = vcmp.eq.s32.totalorder %v1888, 0
    %v1891 = vxor.u32 %v1886, 2147483648
    %v1892 = vsel %vm1890, %v1885, %v1891
    %vm1893 = vcmp.eq.s32.totalorder %v1888, 2
    %v1894 = vxor.u32 %v1885, 2147483648
    %v1895 = vsel %vm1893, %v1894, %v1886
    %v1896 = vsel %vm1889, %v1892, %v1895
    %v1897 = vsel %vm1887, nan, %v1896
    %v1898 = vand.u32 2147483647, %v658
    %vm1899 = vcmp.le.f32.partialorder %v1898, 0.7853982
    %vm1900 = vcmp.lt.s32.totalorder %v658, 0
    %v1901 = vand.u32 %v658, 2139095040
    %v1902 = vshrl.u32 %v1901, 23
    %v1903 = vsub.s32 %v1902, 127
    %v1904 = vand.u32 2147483647, %v658
    %v1905 = vand.u32 %v1904, 8388607
    %v1906 = vor.u32 %v1905, 8388608
    %v1907 = vsub.s32 0, %v1906
    %v1908 = vadd.s32 %v1903, 1
    %vm1909 = vcmp.gt.s32.totalorder %v1908, 0
    %v1910 = vsel %vm1909, %v1908, 0
    %v1911 = vshrl.u32 %v1910, 5
    %v1912 = vand.u32 %v1910, 31
    %v1913 = vsub.s32 32, %v1912
    %v1914 = vshrl.u32 683565275, %v1913
    %v1915 = vshll.u32 683565275, %v1912
    %v1916 = vshrl.u32 2475754826, %v1913
    %v1917 = vor.u32 %v1915, %v1916
    %v1918 = vshll.u32 2475754826, %v1912
    %v1919 = vshrl.u32 2131351028, %v1913
    %v1920 = vor.u32 %v1918, %v1919
    %v1921 = vshll.u32 2131351028, %v1912
    %v1922 = vshrl.u32 2102212464, %v1913
    %v1923 = vor.u32 %v1921, %v1922
    %v1924 = vshll.u32 2102212464, %v1912
    %v1925 = vshrl.u32 920167782, %v1913
    %v1926 = vor.u32 %v1924, %v1925
    %v1927 = vshll.u32 920167782, %v1912
    %v1928 = vshrl.u32 1326507024, %v1913
    %v1929 = vor.u32 %v1927, %v1928
    %vm1930 = vcmp.lt.s32.totalorder %v1911, 1
    %vm1931 = vcmp.lt.s32.totalorder %v1911, 2
    %vm1932 = vcmp.lt.s32.totalorder %v1911, 3
    %vm1933 = vcmp.lt.s32.totalorder %v1911, 4
    %v1934 = vsel %vm1930, %v1914, %v1917
    %v1935 = vsel %vm1933, %v1923, 2102212464
    %v1936 = vsel %vm1932, %v1920, %v1935
    %v1937 = vsel %vm1931, %v1934, %v1936
    %v1938 = vsel %vm1930, %v1917, %v1920
    %v1939 = vsel %vm1933, %v1926, 920167782
    %v1940 = vsel %vm1932, %v1923, %v1939
    %v1941 = vsel %vm1931, %v1938, %v1940
    %v1942 = vsel %vm1930, %v1920, %v1923
    %v1943 = vsel %vm1933, %v1929, 1326507024
    %v1944 = vsel %vm1932, %v1926, %v1943
    %v1945 = vsel %vm1931, %v1942, %v1944
    %v1946 = vshll.u32 %v1906, 8
    %v1947 = vmul.u32.u64.compose %v1946, %v1945
    %v1948 = vextract.low.u32 %v1947
    %v1949 = vextract.high.u32 %v1947
    %v1950 = vmul.u32.u64.compose %v1946, %v1941
    %v1951 = vextract.low.u32 %v1950
    %v1952 = vextract.high.u32 %v1950
    %v1953 = vmul.u32 %v1946, %v1937
    %v1954 = vadd.s32 %v1949, %v1951
    %vm1955 = vc.u32 %v1949, %v1951
    %v1956 = vadd.s32 %v1952, 1
    %v1957 = vsel %vm1955, %v1956, %v1952
    %v1958 = vadd.s32 %v1953, %v1957
    %v1959 = vadd.s32 %v1958, 536870912
    %v1960 = vshrl.u32 %v1959, 30
    %v1961 = vshll.u32 %v1960, 30
    %v1962 = vsub.s32 %v1958, %v1961
    %vm1963 = vcmp.lt.s32.totalorder %v1962, 0
    %v1964 = vsub.s32 0, %v1962
    %v1965 = vsel %vm1963, %v1964, %v1962
    %v1966 = vclz %v1965
    %v1967 = vsub.s32 %v1966, 2
    %vm1968 = vcmp.gt.s32.totalorder 0, %v1967
    %v1969 = vsel %vm1968, 0, %v1967
    %v1970 = vsub.s32 32, %v1969
    %v1971 = vshll.u32 %v1962, %v1969
    %v1972 = vshrl.u32 %v1954, %v1970
    %v1973 = vor.u32 %v1971, %v1972
    %v1974 = vsub.s32 4294967266, %v1969
    %v1975 = vadd.s32 %v1974, 127
    %v1976 = vshll.u32 %v1975, 23
    %v1977 = vor.u32 4788187, %v1976
    %v1978 = vand.u32 2147483647, %v1977
    %v1980 = vcvt.s32.f32 %v1973
    %v1981 = vmul.f32 %v1980, %v1978
    %v1982 = vxor.u32 %v1981, 2147483648
    %v1983 = vsel %vm1900, %v1982, %v1981
    %v1984 = vsub.s32 4, %v1960
    %v1985 = vsel %vm1900, %v1984, %v1960
    %v1986 = vsel %vm1899, %v658, %v1983
    %v1987 = vsel %vm1899, 0, %v1985
    %v1988 = vcosq.f32.pop %v1986
    %v1989 = vsinq.f32.pop %v1986
    %vm1990 = vweird.f32 %v658
    %v1991 = vand.u32 %v1987, 3
    %vm1992 = vcmp.lt.s32.totalorder %v1991, 2
    %vm1993 = vcmp.eq.s32.totalorder %v1991, 0
    %v1994 = vxor.u32 %v1989, 2147483648
    %v1995 = vsel %vm1993, %v1988, %v1994
    %vm1996 = vcmp.eq.s32.totalorder %v1991, 2
    %v1997 = vxor.u32 %v1988, 2147483648
    %v1998 = vsel %vm1996, %v1997, %v1989
    %v1999 = vsel %vm1992, %v1995, %v1998
    %v2000 = vsel %vm1990, nan, %v1999
    %v2001 = vand.u32 2147483647, %v659
    %vm2002 = vcmp.le.f32.partialorder %v2001, 0.7853982
    %vm2003 = vcmp.lt.s32.totalorder %v659, 0
    %v2004 = vand.u32 %v659, 2139095040
    %v2005 = vshrl.u32 %v2004, 23
    %v2006 = vsub.s32 %v2005, 127
    %v2007 = vand.u32 2147483647, %v659
    %v2008 = vand.u32 %v2007, 8388607
    %v2009 = vor.u32 %v2008, 8388608
    %v2010 = vsub.s32 0, %v2009
    %v2011 = vadd.s32 %v2006, 1
    %vm2012 = vcmp.gt.s32.totalorder %v2011, 0
    %v2013 = vsel %vm2012, %v2011, 0
    %v2014 = vshrl.u32 %v2013, 5
    %v2015 = vand.u32 %v2013, 31
    %v2016 = vsub.s32 32, %v2015
    %v2017 = vshrl.u32 683565275, %v2016
    %v2018 = vshll.u32 683565275, %v2015
    %v2019 = vshrl.u32 2475754826, %v2016
    %v2020 = vor.u32 %v2018, %v2019
    %v2021 = vshll.u32 2475754826, %v2015
    %v2022 = vshrl.u32 2131351028, %v2016
    %v2023 = vor.u32 %v2021, %v2022
    %v2024 = vshll.u32 2131351028, %v2015
    %v2025 = vshrl.u32 2102212464, %v2016
    %v2026 = vor.u32 %v2024, %v2025
    %v2027 = vshll.u32 2102212464, %v2015
    %v2028 = vshrl.u32 920167782, %v2016
    %v2029 = vor.u32 %v2027, %v2028
    %v2030 = vshll.u32 920167782, %v2015
    %v2031 = vshrl.u32 1326507024, %v2016
    %v2032 = vor.u32 %v2030, %v2031
    %vm2033 = vcmp.lt.s32.totalorder %v2014, 1
    %vm2034 = vcmp.lt.s32.totalorder %v2014, 2
    %vm2035 = vcmp.lt.s32.totalorder %v2014, 3
    %vm2036 = vcmp.lt.s32.totalorder %v2014, 4
    %v2037 = vsel %vm2033, %v2017, %v2020
    %v2038 = vsel %vm2036, %v2026, 2102212464
    %v2039 = vsel %vm2035, %v2023, %v2038
    %v2040 = vsel %vm2034, %v2037, %v2039
    %v2041 = vsel %vm2033, %v2020, %v2023
    %v2042 = vsel %vm2036, %v2029, 920167782
    %v2043 = vsel %vm2035, %v2026, %v2042
    %v2044 = vsel %vm2034, %v2041, %v2043
    %v2045 = vsel %vm2033, %v2023, %v2026
    %v2046 = vsel %vm2036, %v2032, 1326507024
    %v2047 = vsel %vm2035, %v2029, %v2046
    %v2048 = vsel %vm2034, %v2045, %v2047
    %v2049 = vshll.u32 %v2009, 8
    %v2050 = vmul.u32.u64.compose %v2049, %v2048
    %v2051 = vextract.low.u32 %v2050
    %v2052 = vextract.high.u32 %v2050
    %v2053 = vmul.u32.u64.compose %v2049, %v2044
    %v2054 = vextract.low.u32 %v2053
    %v2055 = vextract.high.u32 %v2053
    %v2056 = vmul.u32 %v2049, %v2040
    %v2057 = vadd.s32 %v2052, %v2054
    %vm2058 = vc.u32 %v2052, %v2054
    %v2059 = vadd.s32 %v2055, 1
    %v2060 = vsel %vm2058, %v2059, %v2055
    %v2061 = vadd.s32 %v2056, %v2060
    %v2062 = vadd.s32 %v2061, 536870912
    %v2063 = vshrl.u32 %v2062, 30
    %v2064 = vshll.u32 %v2063, 30
    %v2065 = vsub.s32 %v2061, %v2064
    %vm2066 = vcmp.lt.s32.totalorder %v2065, 0
    %v2067 = vsub.s32 0, %v2065
    %v2068 = vsel %vm2066, %v2067, %v2065
    %v2069 = vclz %v2068
    %v2070 = vsub.s32 %v2069, 2
    %vm2071 = vcmp.gt.s32.totalorder 0, %v2070
    %v2072 = vsel %vm2071, 0, %v2070
    %v2073 = vsub.s32 32, %v2072
    %v2074 = vshll.u32 %v2065, %v2072
    %v2075 = vshrl.u32 %v2057, %v2073
    %v2076 = vor.u32 %v2074, %v2075
    %v2077 = vsub.s32 4294967266, %v2072
    %v2078 = vadd.s32 %v2077, 127
    %v2079 = vshll.u32 %v2078, 23
    %v2080 = vor.u32 4788187, %v2079
    %v2081 = vand.u32 2147483647, %v2080
    %v2083 = vcvt.s32.f32 %v2076
    %v2084 = vmul.f32 %v2083, %v2081
    %v2085 = vxor.u32 %v2084, 2147483648
    %v2086 = vsel %vm2003, %v2085, %v2084
    %v2087 = vsub.s32 4, %v2063
    %v2088 = vsel %vm2003, %v2087, %v2063
    %v2089 = vsel %vm2002, %v659, %v2086
    %v2090 = vsel %vm2002, 0, %v2088
    %v2091 = vcosq.f32.pop %v2089
    %v2092 = vsinq.f32.pop %v2089
    %vm2093 = vweird.f32 %v659
    %v2094 = vand.u32 %v2090, 3
    %vm2095 = vcmp.lt.s32.totalorder %v2094, 2
    %vm2096 = vcmp.eq.s32.totalorder %v2094, 0
    %v2097 = vxor.u32 %v2092, 2147483648
    %v2098 = vsel %vm2096, %v2091, %v2097
    %vm2099 = vcmp.eq.s32.totalorder %v2094, 2
    %v2100 = vxor.u32 %v2091, 2147483648
    %v2101 = vsel %vm2099, %v2100, %v2092
    %v2102 = vsel %vm2095, %v2098, %v2101
    %v2103 = vsel %vm2093, nan, %v2102
    %v2104 = vand.u32 2147483647, %v660
    %vm2105 = vcmp.le.f32.partialorder %v2104, 0.7853982
    %vm2106 = vcmp.lt.s32.totalorder %v660, 0
    %v2107 = vand.u32 %v660, 2139095040
    %v2108 = vshrl.u32 %v2107, 23
    %v2109 = vsub.s32 %v2108, 127
    %v2110 = vand.u32 2147483647, %v660
    %v2111 = vand.u32 %v2110, 8388607
    %v2112 = vor.u32 %v2111, 8388608
    %v2113 = vsub.s32 0, %v2112
    %v2114 = vadd.s32 %v2109, 1
    %vm2115 = vcmp.gt.s32.totalorder %v2114, 0
    %v2116 = vsel %vm2115, %v2114, 0
    %v2117 = vshrl.u32 %v2116, 5
    %v2118 = vand.u32 %v2116, 31
    %v2119 = vsub.s32 32, %v2118
    %v2120 = vshrl.u32 683565275, %v2119
    %v2121 = vshll.u32 683565275, %v2118
    %v2122 = vshrl.u32 2475754826, %v2119
    %v2123 = vor.u32 %v2121, %v2122
    %v2124 = vshll.u32 2475754826, %v2118
    %v2125 = vshrl.u32 2131351028, %v2119
    %v2126 = vor.u32 %v2124, %v2125
    %v2127 = vshll.u32 2131351028, %v2118
    %v2128 = vshrl.u32 2102212464, %v2119
    %v2129 = vor.u32 %v2127, %v2128
    %v2130 = vshll.u32 2102212464, %v2118
    %v2131 = vshrl.u32 920167782, %v2119
    %v2132 = vor.u32 %v2130, %v2131
    %v2133 = vshll.u32 920167782, %v2118
    %v2134 = vshrl.u32 1326507024, %v2119
    %v2135 = vor.u32 %v2133, %v2134
    %vm2136 = vcmp.lt.s32.totalorder %v2117, 1
    %vm2137 = vcmp.lt.s32.totalorder %v2117, 2
    %vm2138 = vcmp.lt.s32.totalorder %v2117, 3
    %vm2139 = vcmp.lt.s32.totalorder %v2117, 4
    %v2140 = vsel %vm2136, %v2120, %v2123
    %v2141 = vsel %vm2139, %v2129, 2102212464
    %v2142 = vsel %vm2138, %v2126, %v2141
    %v2143 = vsel %vm2137, %v2140, %v2142
    %v2144 = vsel %vm2136, %v2123, %v2126
    %v2145 = vsel %vm2139, %v2132, 920167782
    %v2146 = vsel %vm2138, %v2129, %v2145
    %v2147 = vsel %vm2137, %v2144, %v2146
    %v2148 = vsel %vm2136, %v2126, %v2129
    %v2149 = vsel %vm2139, %v2135, 1326507024
    %v2150 = vsel %vm2138, %v2132, %v2149
    %v2151 = vsel %vm2137, %v2148, %v2150
    %v2152 = vshll.u32 %v2112, 8
    %v2153 = vmul.u32.u64.compose %v2152, %v2151
    %v2154 = vextract.low.u32 %v2153
    %v2155 = vextract.high.u32 %v2153
    %v2156 = vmul.u32.u64.compose %v2152, %v2147
    %v2157 = vextract.low.u32 %v2156
    %v2158 = vextract.high.u32 %v2156
    %v2159 = vmul.u32 %v2152, %v2143
    %v2160 = vadd.s32 %v2155, %v2157
    %vm2161 = vc.u32 %v2155, %v2157
    %v2162 = vadd.s32 %v2158, 1
    %v2163 = vsel %vm2161, %v2162, %v2158
    %v2164 = vadd.s32 %v2159, %v2163
    %v2165 = vadd.s32 %v2164, 536870912
    %v2166 = vshrl.u32 %v2165, 30
    %v2167 = vshll.u32 %v2166, 30
    %v2168 = vsub.s32 %v2164, %v2167
    %vm2169 = vcmp.lt.s32.totalorder %v2168, 0
    %v2170 = vsub.s32 0, %v2168
    %v2171 = vsel %vm2169, %v2170, %v2168
    %v2172 = vclz %v2171
    %v2173 = vsub.s32 %v2172, 2
    %vm2174 = vcmp.gt.s32.totalorder 0, %v2173
    %v2175 = vsel %vm2174, 0, %v2173
    %v2176 = vsub.s32 32, %v2175
    %v2177 = vshll.u32 %v2168, %v2175
    %v2178 = vshrl.u32 %v2160, %v2176
    %v2179 = vor.u32 %v2177, %v2178
    %v2180 = vsub.s32 4294967266, %v2175
    %v2181 = vadd.s32 %v2180, 127
    %v2182 = vshll.u32 %v2181, 23
    %v2183 = vor.u32 4788187, %v2182
    %v2184 = vand.u32 2147483647, %v2183
    %v2186 = vcvt.s32.f32 %v2179
    %v2187 = vmul.f32 %v2186, %v2184
    %v2188 = vxor.u32 %v2187, 2147483648
    %v2189 = vsel %vm2106, %v2188, %v2187
    %v2190 = vsub.s32 4, %v2166
    %v2191 = vsel %vm2106, %v2190, %v2166
    %v2192 = vsel %vm2105, %v660, %v2189
    %v2193 = vsel %vm2105, 0, %v2191
    %v2194 = vcosq.f32.pop %v2192
    %v2195 = vsinq.f32.pop %v2192
    %vm2196 = vweird.f32 %v660
    %v2197 = vand.u32 %v2193, 3
    %vm2198 = vcmp.lt.s32.totalorder %v2197, 2
    %vm2199 = vcmp.eq.s32.totalorder %v2197, 0
    %v2200 = vxor.u32 %v2195, 2147483648
    %v2201 = vsel %vm2199, %v2194, %v2200
    %vm2202 = vcmp.eq.s32.totalorder %v2197, 2
    %v2203 = vxor.u32 %v2194, 2147483648
    %v2204 = vsel %vm2202, %v2203, %v2195
    %v2205 = vsel %vm2198, %v2201, %v2204
    %v2206 = vsel %vm2196, nan, %v2205
    %v2207 = vand.u32 2147483647, %v661
    %vm2208 = vcmp.le.f32.partialorder %v2207, 0.7853982
    %vm2209 = vcmp.lt.s32.totalorder %v661, 0
    %v2210 = vand.u32 %v661, 2139095040
    %v2211 = vshrl.u32 %v2210, 23
    %v2212 = vsub.s32 %v2211, 127
    %v2213 = vand.u32 2147483647, %v661
    %v2214 = vand.u32 %v2213, 8388607
    %v2215 = vor.u32 %v2214, 8388608
    %v2216 = vsub.s32 0, %v2215
    %v2217 = vadd.s32 %v2212, 1
    %vm2218 = vcmp.gt.s32.totalorder %v2217, 0
    %v2219 = vsel %vm2218, %v2217, 0
    %v2220 = vshrl.u32 %v2219, 5
    %v2221 = vand.u32 %v2219, 31
    %v2222 = vsub.s32 32, %v2221
    %v2223 = vshrl.u32 683565275, %v2222
    %v2224 = vshll.u32 683565275, %v2221
    %v2225 = vshrl.u32 2475754826, %v2222
    %v2226 = vor.u32 %v2224, %v2225
    %v2227 = vshll.u32 2475754826, %v2221
    %v2228 = vshrl.u32 2131351028, %v2222
    %v2229 = vor.u32 %v2227, %v2228
    %v2230 = vshll.u32 2131351028, %v2221
    %v2231 = vshrl.u32 2102212464, %v2222
    %v2232 = vor.u32 %v2230, %v2231
    %v2233 = vshll.u32 2102212464, %v2221
    %v2234 = vshrl.u32 920167782, %v2222
    %v2235 = vor.u32 %v2233, %v2234
    %v2236 = vshll.u32 920167782, %v2221
    %v2237 = vshrl.u32 1326507024, %v2222
    %v2238 = vor.u32 %v2236, %v2237
    %vm2239 = vcmp.lt.s32.totalorder %v2220, 1
    %vm2240 = vcmp.lt.s32.totalorder %v2220, 2
    %vm2241 = vcmp.lt.s32.totalorder %v2220, 3
    %vm2242 = vcmp.lt.s32.totalorder %v2220, 4
    %v2243 = vsel %vm2239, %v2223, %v2226
    %v2244 = vsel %vm2242, %v2232, 2102212464
    %v2245 = vsel %vm2241, %v2229, %v2244
    %v2246 = vsel %vm2240, %v2243, %v2245
    %v2247 = vsel %vm2239, %v2226, %v2229
    %v2248 = vsel %vm2242, %v2235, 920167782
    %v2249 = vsel %vm2241, %v2232, %v2248
    %v2250 = vsel %vm2240, %v2247, %v2249
    %v2251 = vsel %vm2239, %v2229, %v2232
    %v2252 = vsel %vm2242, %v2238, 1326507024
    %v2253 = vsel %vm2241, %v2235, %v2252
    %v2254 = vsel %vm2240, %v2251, %v2253
    %v2255 = vshll.u32 %v2215, 8
    %v2256 = vmul.u32.u64.compose %v2255, %v2254
    %v2257 = vextract.low.u32 %v2256
    %v2258 = vextract.high.u32 %v2256
    %v2259 = vmul.u32.u64.compose %v2255, %v2250
    %v2260 = vextract.low.u32 %v2259
    %v2261 = vextract.high.u32 %v2259
    %v2262 = vmul.u32 %v2255, %v2246
    %v2263 = vadd.s32 %v2258, %v2260
    %vm2264 = vc.u32 %v2258, %v2260
    %v2265 = vadd.s32 %v2261, 1
    %v2266 = vsel %vm2264, %v2265, %v2261
    %v2267 = vadd.s32 %v2262, %v2266
    %v2268 = vadd.s32 %v2267, 536870912
    %v2269 = vshrl.u32 %v2268, 30
    %v2270 = vshll.u32 %v2269, 30
    %v2271 = vsub.s32 %v2267, %v2270
    %vm2272 = vcmp.lt.s32.totalorder %v2271, 0
    %v2273 = vsub.s32 0, %v2271
    %v2274 = vsel %vm2272, %v2273, %v2271
    %v2275 = vclz %v2274
    %v2276 = vsub.s32 %v2275, 2
    %vm2277 = vcmp.gt.s32.totalorder 0, %v2276
    %v2278 = vsel %vm2277, 0, %v2276
    %v2279 = vsub.s32 32, %v2278
    %v2280 = vshll.u32 %v2271, %v2278
    %v2281 = vshrl.u32 %v2263, %v2279
    %v2282 = vor.u32 %v2280, %v2281
    %v2283 = vsub.s32 4294967266, %v2278
    %v2284 = vadd.s32 %v2283, 127
    %v2285 = vshll.u32 %v2284, 23
    %v2286 = vor.u32 4788187, %v2285
    %v2287 = vand.u32 2147483647, %v2286
    %v2289 = vcvt.s32.f32 %v2282
    %v2290 = vmul.f32 %v2289, %v2287
    %v2291 = vxor.u32 %v2290, 2147483648
    %v2292 = vsel %vm2209, %v2291, %v2290
    %v2293 = vsub.s32 4, %v2269
    %v2294 = vsel %vm2209, %v2293, %v2269
    %v2295 = vsel %vm2208, %v661, %v2292
    %v2296 = vsel %vm2208, 0, %v2294
    %v2297 = vcosq.f32.pop %v2295
    %v2298 = vsinq.f32.pop %v2295
    %vm2299 = vweird.f32 %v661
    %v2300 = vand.u32 %v2296, 3
    %vm2301 = vcmp.lt.s32.totalorder %v2300, 2
    %vm2302 = vcmp.eq.s32.totalorder %v2300, 0
    %v2303 = vxor.u32 %v2298, 2147483648
    %v2304 = vsel %vm2302, %v2297, %v2303
    %vm2305 = vcmp.eq.s32.totalorder %v2300, 2
    %v2306 = vxor.u32 %v2297, 2147483648
    %v2307 = vsel %vm2305, %v2306, %v2298
    %v2308 = vsel %vm2301, %v2304, %v2307
    %v2309 = vsel %vm2299, nan, %v2308
    %v2310 = vmul.f32 %v540, %v764
    %v2311 = vmul.f32 %v547, %v867
    %v2312 = vmul.f32 %v554, %v970
    %v2313 = vmul.f32 %v561, %v1073
    %v2314 = vmul.f32 %v568, %v1176
    %v2315 = vmul.f32 %v575, %v1279
    %v2316 = vmul.f32 %v582, %v1382
    %v2317 = vmul.f32 %v589, %v1485
    %v2318 = vmul.f32 %v596, %v1588
    %v2319 = vmul.f32 %v603, %v1691
    %v2320 = vmul.f32 %v610, %v1794
    %v2321 = vmul.f32 %v617, %v1897
    %v2322 = vmul.f32 %v624, %v2000
    %v2323 = vmul.f32 %v631, %v2103
    %v2324 = vmul.f32 %v638, %v2206
    %v2325 = vmul.f32 %v645, %v2309
    %s2326 = sld [smem:[#allocation3]]
    %s2327 = sld [smem:[#allocation3 + $0x1]]
    %v2328 = vstv %s2326
    %v2329 = vmul.f32 %v2310, %v2328
    %v2330 = vmul.f32 %v2311, %v2328
    %v2331 = vmul.f32 %v2312, %v2328
    %v2332 = vmul.f32 %v2313, %v2328
    %v2333 = vmul.f32 %v2314, %v2328
    %v2334 = vmul.f32 %v2315, %v2328
    %v2335 = vmul.f32 %v2316, %v2328
    %v2336 = vmul.f32 %v2317, %v2328
    %v2337 = vmul.f32 %v2318, %v2328
    %v2338 = vmul.f32 %v2319, %v2328
    %v2339 = vmul.f32 %v2320, %v2328
    %v2340 = vmul.f32 %v2321, %v2328
    %v2341 = vmul.f32 %v2322, %v2328
    %v2342 = vmul.f32 %v2323, %v2328
    %v2343 = vmul.f32 %v2324, %v2328
    %v2344 = vmul.f32 %v2325, %v2328
    %v2361 = vcombine.low %v2329, %v2330
    %v2362 = vcombine.low %v2331, %v2332
    %v2363 = vcombine.low %v2333, %v2334
    %v2364 = vcombine.low %v2335, %v2336
    %v2366 = vunpack.c.l.s4 1966171168
    %v2367 = vunpack.c.0.s8 %v2366
    %v2368 = vlaneseq
    %v2369 = vshrl.u32 %v2368, 7
    %v2370 = vsub.s32 %v2367, %v2369
    %v2371 = vrot.slane %v2361, %v2370
    %v2373 = vunpack.c.l.s4 1966171168
    %v2374 = vunpack.c.0.s8 %v2373
    %v2375 = vlaneseq
    %v2376 = vshrl.u32 %v2375, 7
    %v2377 = vsub.s32 %v2374, %v2376
    %v2378 = vrot.slane %v2362, %v2377
    %v2380 = vunpack.c.l.s4 1966171168
    %v2381 = vunpack.c.0.s8 %v2380
    %v2382 = vlaneseq
    %v2383 = vshrl.u32 %v2382, 7
    %v2384 = vsub.s32 %v2381, %v2383
    %v2385 = vrot.slane %v2363, %v2384
    %v2387 = vunpack.c.l.s4 1966171168
    %v2388 = vunpack.c.0.s8 %v2387
    %v2389 = vlaneseq
    %v2390 = vshrl.u32 %v2389, 7
    %v2391 = vsub.s32 %v2388, %v2390
    %v2392 = vrot.slane %v2364, %v2391
    %v2393 = vcombine.low %v2371, %v2378
    %v2394 = vcombine.low %v2385, %v2392
    %v2396 = vunpack.c.l.s4 1966171168
    %v2397 = vunpack.c.0.s8 %v2396
    %v2398 = vlaneseq
    %v2399 = vshrl.u32 %v2398, 7
    %v2400 = vsub.s32 %v2397, %v2399
    %v2401 = vrot.slane %v2393, %v2400
    %v2403 = vunpack.c.l.s4 1966171168
    %v2404 = vunpack.c.0.s8 %v2403
    %v2405 = vlaneseq
    %v2406 = vshrl.u32 %v2405, 7
    %v2407 = vsub.s32 %v2404, %v2406
    %v2408 = vrot.slane %v2394, %v2407
    %v2409 = vcombine.low %v2401, %v2408
    %v2410 = vcombine.low %v2337, %v2338
    %v2411 = vcombine.low %v2339, %v2340
    %v2412 = vcombine.low %v2341, %v2342
    %v2413 = vcombine.low %v2343, %v2344
    %v2415 = vunpack.c.l.s4 1966171168
    %v2416 = vunpack.c.0.s8 %v2415
    %v2417 = vlaneseq
    %v2418 = vshrl.u32 %v2417, 7
    %v2419 = vsub.s32 %v2416, %v2418
    %v2420 = vrot.slane %v2410, %v2419
    %v2422 = vunpack.c.l.s4 1966171168
    %v2423 = vunpack.c.0.s8 %v2422
    %v2424 = vlaneseq
    %v2425 = vshrl.u32 %v2424, 7
    %v2426 = vsub.s32 %v2423, %v2425
    %v2427 = vrot.slane %v2411, %v2426
    %v2429 = vunpack.c.l.s4 1966171168
    %v2430 = vunpack.c.0.s8 %v2429
    %v2431 = vlaneseq
    %v2432 = vshrl.u32 %v2431, 7
    %v2433 = vsub.s32 %v2430, %v2432
    %v2434 = vrot.slane %v2412, %v2433
    %v2436 = vunpack.c.l.s4 1966171168
    %v2437 = vunpack.c.0.s8 %v2436
    %v2438 = vlaneseq
    %v2439 = vshrl.u32 %v2438, 7
    %v2440 = vsub.s32 %v2437, %v2439
    %v2441 = vrot.slane %v2413, %v2440
    %v2442 = vcombine.low %v2420, %v2427
    %v2443 = vcombine.low %v2434, %v2441
    %v2445 = vunpack.c.l.s4 1966171168
    %v2446 = vunpack.c.0.s8 %v2445
    %v2447 = vlaneseq
    %v2448 = vshrl.u32 %v2447, 7
    %v2449 = vsub.s32 %v2446, %v2448
    %v2450 = vrot.slane %v2442, %v2449
    %v2452 = vunpack.c.l.s4 1966171168
    %v2453 = vunpack.c.0.s8 %v2452
    %v2454 = vlaneseq
    %v2455 = vshrl.u32 %v2454, 7
    %v2456 = vsub.s32 %v2453, %v2455
    %v2457 = vrot.slane %v2443, %v2456
    %v2458 = vcombine.low %v2450, %v2457
    %v2461 = vadd.f32 %v41, %v2409
    %v2462 = vadd.f32 %v42, %v2458
    %v2463 = vstv %s2327
    %v2464 = vadd.f32 %v2461, %v2463
    %v2465 = vadd.f32 %v2462, %v2463
    %2466 = vst [vmem:[#allocation8] sm:$0xff] %v2464
    %2467 = vst [vmem:[#allocation8 + $0x8] sm:$0xff] %v2465
    // Predicated region
    $region22: #{tpu_custom_call.1} parent=1 // pred_check
      _
    $region23: #{tpu_custom_call.1} parent=1 // pred_check_branch
      %2469 = sbr.rel (0) target = $region25
    $region24: #{tpu_custom_call.1} parent=1 // pred_region
      %s2471 = ssub.s32 256, 256
      %2472 = vsyncadd [#allocation5], %s2471
      %s2474 = sshll.u32 [#allocation8], 4
      %s2475 = int_to_ptr.vmem [resolvable:$true] %s2474
      %2477 = dma.vmem_to_hbm [thread:$0]  %s2475, 256, %s3, [#allocation5]
    $region25: #{tpu_custom_call.1} parent=1 // pred_fallthru
      _
    // Predicated region
    $region26: #{tpu_custom_call.1} parent=1 // pred_check
      _
    $region27: #{tpu_custom_call.1} parent=1 // pred_check_branch
      %2479 = sbr.rel (0) target = $region29
    $region28: #{tpu_custom_call.1} parent=1 // pred_region
      %2480 = dma.done [#allocation5], 256
    $region29: #{tpu_custom_call.1} parent=1 // pred_fallthru
      _
    %2481 = vsyncpa [#allocation4], 1
    %2482 = vsyncpa [#allocation5], 1
    %2483 = vsyncpa [#allocation6], 1

</llo_original>
